<compile_context>
chip_gen: v7x
topology: tpu7x:2x2x1
jax: 0.10.0
libtpu: 0.0.40
codegen_flags: <defaults>
</compile_context>

<pallas_src>
import numpy as np
import jax
import jax.numpy as jnp
from jax.experimental import pallas as pl
from jax.experimental.pallas import tpu as pltpu

INPUT_CHANNEL = 1
CHANNELS = [8, 32, 32, 32]
EMBED_DIM = 32
EMBED_SCALE = 1.0

N_LAYERS = len(CHANNELS)
HALF_EMBED = EMBED_DIM // 2
SUM_CH = sum(CHANNELS)                 # 104 = 13 * 8 -> sublane-aligned row slices

# Column layout of the packed "vector parameter" slab, shape (32, N_VEC_COLS).
COL_GFP = 0                            # GFP weights * 2*pi            (16 rows)
COL_BEMB = 1                           # embed Linear bias             (32 rows)
COL_LW0 = 2                            # layer-0 weight column (K=1)   (8 rows)
COL_BIAS = 3                           # fused biases lb_i+db_i, i=0..3
COL_FW = COL_BIAS + N_LAYERS           # final Linear weight column    (32 rows)
COL_FB = COL_FW + 1                    # final Linear bias             (1 row)
N_VEC_COLS = COL_FB + 1
VEC_ROWS = max(EMBED_DIM, max(CHANNELS))


def _silu(x):
    # x * sigmoid(x) through a single tanh: one EUP op per element.
    return x * (0.5 * (jnp.tanh(0.5 * x) + 1.0))


def smlp_kernel(hx_ref, w_sin_ref, w_cos_ref, dstack_ref, *rest):
    lw_refs = rest[:N_LAYERS - 1]
    vec_ref = rest[N_LAYERS - 1]
    out_ref = rest[-1]

    mm_dtype = w_sin_ref.dtype          # matmul operand dtype (f32 or bf16)

    h = hx_ref[0:1, :]                  # (1, TB)
    t = hx_ref[1:2, :]                  # (1, TB)

    # --- time embedding: GFP (2*pi folded into W) + Linear + SiLU, no concat ---
    w_gfp = vec_ref[0:HALF_EMBED, COL_GFP:COL_GFP + 1]          # (16, 1)
    x_proj = w_gfp * t                                          # (16, TB)
    embed = (jnp.dot(w_sin_ref[...], jnp.sin(x_proj).astype(mm_dtype),
                     preferred_element_type=jnp.float32)
             + jnp.dot(w_cos_ref[...], jnp.cos(x_proj).astype(mm_dtype),
                       preferred_element_type=jnp.float32))      # (32, TB)
    embed = _silu(embed + vec_ref[:, COL_BEMB:COL_BEMB + 1])

    # --- all dense(embed) contributions in one stacked matmul ---
    dcontrib = jnp.dot(dstack_ref[...], embed.astype(mm_dtype),
                       preferred_element_type=jnp.float32)       # (104, TB)

    # --- layer 0: K = input_channel = 1 -> VPU outer product ---
    c0 = CHANNELS[0]
    cur = vec_ref[0:c0, COL_LW0:COL_LW0 + 1] * h                 # (8, TB)
    cur = cur + dcontrib[0:c0, :] + vec_ref[0:c0, COL_BIAS:COL_BIAS + 1]
    hcur = _silu(cur)

    # --- layers 1..N-1: lw_i @ hcur + dstack row-slice + fused bias ---
    row = c0
    for li in range(1, N_LAYERS):
        c = CHANNELS[li]
        cur = jnp.dot(lw_refs[li - 1][...], hcur.astype(mm_dtype),
                      preferred_element_type=jnp.float32)        # (C_li, TB)
        cur = cur + dcontrib[row:row + c, :]
        cur = cur + vec_ref[0:c, COL_BIAS + li:COL_BIAS + li + 1]
        hcur = _silu(cur)
        row += c

    # --- final projection (N = 1): multiply + sublane (XLU) reduce ---
    fw = vec_ref[0:CHANNELS[-1], COL_FW:COL_FW + 1]              # (32, 1)
    out = jnp.sum(fw * hcur, axis=0, keepdims=True)              # (1, TB)
    out = out + vec_ref[0:1, COL_FB:COL_FB + 1]
    out_ref[...] = out.astype(out_ref.dtype)


def _round_up(x, m):
    return ((x + m - 1) // m) * m


def init_params(key):
    """Deterministic synthetic parameters mimicking nn.Linear default init."""
    params = {}
    keys = iter(jax.random.split(key, 64))

    def linear(fan_in, fan_out):
        bound = 1.0 / np.sqrt(fan_in)
        w = jax.random.uniform(next(keys), (fan_in, fan_out), jnp.float32, -bound, bound)
        b = jax.random.uniform(next(keys), (1, fan_out), jnp.float32, -bound, bound)
        return w, b

    # GaussianFourierProjection buffer: randn(embed_dim // 2) * scale
    params["w_gfp"] = (jax.random.normal(next(keys), (1, HALF_EMBED), jnp.float32)
                       * EMBED_SCALE)
    # embed = Sequential(GFP, Linear(embed_dim, embed_dim))
    params["w_emb"], params["b_emb"] = linear(EMBED_DIM, EMBED_DIM)
    # layers: Linear(input_channel, ch0), Linear(ch_i, ch_{i+1}); denses: Linear(embed, ch_i)
    layer_dims = [INPUT_CHANNEL] + CHANNELS
    for i in range(N_LAYERS):
        params[f"lw{i}"], params[f"lb{i}"] = linear(layer_dims[i], layer_dims[i + 1])
        params[f"dw{i}"], params[f"db{i}"] = linear(EMBED_DIM, CHANNELS[i])
    # final: Linear(channels[-1], input_channel)
    params["fw"], params["fb"] = linear(CHANNELS[-1], INPUT_CHANNEL)
    return params


def pack_params(params, matmul_dtype=jnp.float32):
    """Feature-major transpose, split W_emb, stack denses, pack tiny vectors."""

    def col(v):
        v = jnp.asarray(v, jnp.float32).reshape(-1, 1)
        return jnp.pad(v, ((0, VEC_ROWS - v.shape[0]), (0, 0)))

    cols = [None] * N_VEC_COLS
    cols[COL_GFP] = col(params["w_gfp"].reshape(-1) * (2.0 * np.pi))
    cols[COL_BEMB] = col(params["b_emb"])
    cols[COL_LW0] = col(params["lw0"])
    for i in range(N_LAYERS):
        cols[COL_BIAS + i] = col(params[f"lb{i}"] + params[f"db{i}"])
    cols[COL_FW] = col(params["fw"])
    cols[COL_FB] = col(params["fb"])
    vec_slab = jnp.concatenate(cols, axis=1)                      # (32, 9) f32

    w_emb_fm = jnp.asarray(params["w_emb"], jnp.float32).T        # (32out, 32in)
    w_sin = w_emb_fm[:, :HALF_EMBED].astype(matmul_dtype)         # (32, 16)
    w_cos = w_emb_fm[:, HALF_EMBED:].astype(matmul_dtype)         # (32, 16)
    dstack = jnp.concatenate(
        [jnp.asarray(params[f"dw{i}"], jnp.float32).T for i in range(N_LAYERS)],
        axis=0).astype(matmul_dtype)                              # (104, 32)
    lws = [jnp.asarray(params[f"lw{i}"], jnp.float32).T.astype(matmul_dtype)
           for i in range(1, N_LAYERS)]                           # (C_i, C_{i-1})
    return w_sin, w_cos, dstack, lws, vec_slab


def _choose_tiling(B, tile_b):
    """128-aligned lane tile; >=2 (even) grid steps when B spans >1 lane block."""
    tile_b = max(128, _round_up(int(tile_b), 128))
    b128 = _round_up(max(B, 1), 128)
    if b128 > 128:
        # Cap the tile so the grid has at least two steps (v7x megacore).
        tile_b = min(tile_b, _round_up(-(-b128 // 2), 128))
        b_pad = _round_up(b128, 2 * tile_b)   # even number of grid steps
    else:
        tile_b = 128
        b_pad = 128
    return tile_b, b_pad


def smlp_forward(h, t, params, tile_b=8192, matmul_dtype=jnp.bfloat16):
    """h: (B, INPUT_CHANNEL) f32, t: (B,) f32 -> (B, INPUT_CHANNEL) f32.

    matmul_dtype=jnp.bfloat16 is the v6e/v7x fast path (f32 accumulation);
    pass jnp.float32 for bit-tighter results / validation.
    """
    assert INPUT_CHANNEL == 1  # outer-product / reduce fast paths assume module default
    B = h.shape[0]
    w_sin, w_cos, dstack, lws, vec_slab = pack_params(params, matmul_dtype)

    tile_b, b_pad = _choose_tiling(B, tile_b)

    # Pack h and t into one (2, b_pad) streamed slab: a single per-step DMA.
    hx = jnp.concatenate([h.astype(jnp.float32).T,
                          t.astype(jnp.float32).reshape(1, -1)], axis=0)  # (2, B)
    hx = jnp.pad(hx, ((0, 0), (0, b_pad - B)))

    args = [hx, w_sin, w_cos, dstack, *lws, vec_slab]

    def resident(a):
        return pl.BlockSpec(a.shape, lambda i: (0, 0))

    in_specs = ([pl.BlockSpec((2, tile_b), lambda i: (0, i))]
                + [resident(a) for a in args[1:]])

    flops = 2 * b_pad * (EMBED_DIM * HALF_EMBED * 2            # split embed matmuls
                         + SUM_CH * EMBED_DIM                  # stacked dense matmul
                         + CHANNELS[0]                          # layer-0 outer product
                         + sum(CHANNELS[i] * CHANNELS[i - 1]
                               for i in range(1, N_LAYERS))     # trunk matmuls
                         + CHANNELS[-1])                        # final reduce
    transcendentals = b_pad * (2 * HALF_EMBED + EMBED_DIM + SUM_CH)
    bytes_accessed = (4 * b_pad * 3
                      + sum(int(np.prod(a.shape)) * a.dtype.itemsize for a in args[1:]))

    out_fm = pl.pallas_call(
        smlp_kernel,
        out_shape=jax.ShapeDtypeStruct((INPUT_CHANNEL, b_pad), jnp.float32),
        grid_spec=pltpu.PrefetchScalarGridSpec(
            num_scalar_prefetch=0,
            grid=(b_pad // tile_b,),
            in_specs=in_specs,
            out_specs=pl.BlockSpec((INPUT_CHANNEL, tile_b), lambda i: (0, i)),
        ),
        compiler_params=pltpu.CompilerParams(
            dimension_semantics=("parallel",),     # shard batch tiles across TCs (v7x)
            vmem_limit_bytes=32 * 1024 * 1024,     # safe on v5e/v6e/v7x
        ),
        cost_estimate=pl.CostEstimate(
            flops=int(flops),
            transcendentals=int(transcendentals),
            bytes_accessed=int(bytes_accessed)),
    )(*args)
    return out_fm[:, :B].T


def smlp_reference(h, t, params):
    """Pure-JAX reference (mirrors the PyTorch forward) for validation."""
    t2 = t.reshape(-1, 1)
    x_proj = t2 * params["w_gfp"] * 2.0 * np.pi
    gfp = jnp.concatenate([jnp.sin(x_proj), jnp.cos(x_proj)], axis=-1)
    embed = gfp @ params["w_emb"] + params["b_emb"]
    embed = embed * jax.nn.sigmoid(embed)
    for i in range(N_LAYERS):
        cur = h @ params[f"lw{i}"] + params[f"lb{i}"]
        cur = cur + embed @ params[f"dw{i}"] + params[f"db{i}"]
        h = cur * jax.nn.sigmoid(cur)
    return h @ params["fw"] + params["fb"]


if __name__ == "__main__":
    key = jax.random.PRNGKey(0)
    k_param, k_h, k_t = jax.random.split(key, 3)

    params = init_params(k_param)

    # Test 1: f32 matmul path, small batch (single 128-lane tile), tight tolerance.
    B = 8
    h = jax.random.normal(k_h, (B, INPUT_CHANNEL), jnp.float32)
    t = jax.random.uniform(k_t, (B,), jnp.float32)
    out = jax.block_until_ready(smlp_forward(h, t, params, matmul_dtype=jnp.float32))
    ref = smlp_reference(h, t, params)
    assert out.shape == (B, INPUT_CHANNEL)
    np.testing.assert_allclose(np.asarray(out), np.asarray(ref), atol=1e-5, rtol=1e-4)

    # Test 2: ragged batch, multi-step even grid, bf16 MXU operands (v6e/v7x path).
    B2 = 300
    h2 = jax.random.normal(jax.random.fold_in(k_h, 1), (B2, INPUT_CHANNEL), jnp.float32)
    t2 = jax.random.uniform(jax.random.fold_in(k_t, 1), (B2,), jnp.float32)
    out2 = jax.block_until_ready(
        smlp_forward(h2, t2, params, tile_b=128, matmul_dtype=jnp.bfloat16))
    ref2 = smlp_reference(h2, t2, params)
    assert out2.shape == (B2, INPUT_CHANNEL)
    np.testing.assert_allclose(np.asarray(out2), np.asarray(ref2), atol=5e-2, rtol=5e-2)

    print("KERNEL_OK")
</pallas_src>

<mosaic_0001>
module attributes {stable_mosaic.version = 11 : i64} {
  func.func @smlp_kernel(%arg0: i32, %arg1: memref<2x128xf32, #tpu.memory_space<vmem>>, %arg2: memref<32x16xf32, #tpu.memory_space<vmem>>, %arg3: memref<32x16xf32, #tpu.memory_space<vmem>>, %arg4: memref<104x32xf32, #tpu.memory_space<vmem>>, %arg5: memref<32x8xf32, #tpu.memory_space<vmem>>, %arg6: memref<32x32xf32, #tpu.memory_space<vmem>>, %arg7: memref<32x32xf32, #tpu.memory_space<vmem>>, %arg8: memref<32x9xf32, #tpu.memory_space<vmem>>, %arg9: memref<1x128xf32, #tpu.memory_space<vmem>>) attributes {dimension_semantics = [#tpu.dimension_semantics<parallel>], iteration_bounds = array<i64: 1>, scalar_prefetch = 0 : i64, scratch_operands = 0 : i64, tpu.core_type = #tpu.core_type<tc>, window_params = [{transform_indices = @transform_0, window_bounds = array<i64: 2, 128>}, {pipeline_mode = #tpu.pipeline_mode<synchronous>, transform_indices = @transform_1, window_bounds = array<i64: 32, 16>}, {pipeline_mode = #tpu.pipeline_mode<synchronous>, transform_indices = @transform_2, window_bounds = array<i64: 32, 16>}, {pipeline_mode = #tpu.pipeline_mode<synchronous>, transform_indices = @transform_3, window_bounds = array<i64: 104, 32>}, {pipeline_mode = #tpu.pipeline_mode<synchronous>, transform_indices = @transform_4, window_bounds = array<i64: 32, 8>}, {pipeline_mode = #tpu.pipeline_mode<synchronous>, transform_indices = @transform_5, window_bounds = array<i64: 32, 32>}, {pipeline_mode = #tpu.pipeline_mode<synchronous>, transform_indices = @transform_6, window_bounds = array<i64: 32, 32>}, {pipeline_mode = #tpu.pipeline_mode<synchronous>, transform_indices = @transform_7, window_bounds = array<i64: 32, 9>}, {transform_indices = @transform_8, window_bounds = array<i64: 1, 128>}]} {
    %c0 = arith.constant 0 : index
    %c0_0 = arith.constant 0 : index
    %0 = vector.load %arg1[%c0, %c0_0] : memref<2x128xf32, #tpu.memory_space<vmem>>, vector<1x128xf32>
    %c1 = arith.constant 1 : index
    %c0_1 = arith.constant 0 : index
    %1 = vector.load %arg1[%c1, %c0_1] : memref<2x128xf32, #tpu.memory_space<vmem>>, vector<1x128xf32>
    %c0_2 = arith.constant 0 : index
    %c0_3 = arith.constant 0 : index
    %2 = vector.load %arg8[%c0_2, %c0_3] : memref<32x9xf32, #tpu.memory_space<vmem>>, vector<16x1xf32>
    %3 = vector.broadcast %2 : vector<16x1xf32> to vector<16x128xf32>
    %4 = vector.broadcast %1 : vector<1x128xf32> to vector<16x128xf32>
    %5 = arith.mulf %3, %4 : vector<16x128xf32>
    %c0_4 = arith.constant 0 : index
    %c0_5 = arith.constant 0 : index
    %6 = vector.load %arg2[%c0_4, %c0_5] : memref<32x16xf32, #tpu.memory_space<vmem>>, vector<32x16xf32>
    %7 = math.sin %5 : vector<16x128xf32>
    %cst = arith.constant dense<0.000000e+00> : vector<32x128xf32>
    %8 = tpu.matmul %6, %7, %cst {dimension_numbers = #tpu.dot_dimension_numbers<[1], [0], [0], [1], [0, 0, 1, 1], [], []>} : vector<32x16xf32>, vector<16x128xf32>, vector<32x128xf32> -> vector<32x128xf32>
    %c0_6 = arith.constant 0 : index
    %c0_7 = arith.constant 0 : index
    %9 = vector.load %arg3[%c0_6, %c0_7] : memref<32x16xf32, #tpu.memory_space<vmem>>, vector<32x16xf32>
    %10 = math.cos %5 : vector<16x128xf32>
    %cst_8 = arith.constant dense<0.000000e+00> : vector<32x128xf32>
    %11 = tpu.matmul %9, %10, %cst_8 {dimension_numbers = #tpu.dot_dimension_numbers<[1], [0], [0], [1], [0, 0, 1, 1], [], []>} : vector<32x16xf32>, vector<16x128xf32>, vector<32x128xf32> -> vector<32x128xf32>
    %12 = arith.addf %8, %11 : vector<32x128xf32>
    %c0_9 = arith.constant 0 : index
    %c1_10 = arith.constant 1 : index
    %13 = vector.load %arg8[%c0_9, %c1_10] : memref<32x9xf32, #tpu.memory_space<vmem>>, vector<32x1xf32>
    %14 = vector.broadcast %13 : vector<32x1xf32> to vector<32x128xf32>
    %15 = arith.addf %12, %14 : vector<32x128xf32>
    %cst_11 = arith.constant 5.000000e-01 : f32
    %16 = vector.broadcast %cst_11 : f32 to vector<32x128xf32>
    %17 = arith.mulf %16, %15 : vector<32x128xf32>
    %18 = math.tanh %17 : vector<32x128xf32>
    %cst_12 = arith.constant 1.000000e+00 : f32
    %19 = vector.broadcast %cst_12 : f32 to vector<32x128xf32>
    %20 = arith.addf %18, %19 : vector<32x128xf32>
    %cst_13 = arith.constant 5.000000e-01 : f32
    %21 = vector.broadcast %cst_13 : f32 to vector<32x128xf32>
    %22 = arith.mulf %21, %20 : vector<32x128xf32>
    %23 = arith.mulf %15, %22 : vector<32x128xf32>
    %c0_14 = arith.constant 0 : index
    %c0_15 = arith.constant 0 : index
    %24 = vector.load %arg4[%c0_14, %c0_15] : memref<104x32xf32, #tpu.memory_space<vmem>>, vector<104x32xf32>
    %cst_16 = arith.constant dense<0.000000e+00> : vector<104x128xf32>
    %25 = tpu.matmul %24, %23, %cst_16 {dimension_numbers = #tpu.dot_dimension_numbers<[1], [0], [0], [1], [0, 0, 1, 1], [], []>} : vector<104x32xf32>, vector<32x128xf32>, vector<104x128xf32> -> vector<104x128xf32>
    %c0_17 = arith.constant 0 : index
    %c2 = arith.constant 2 : index
    %26 = vector.load %arg8[%c0_17, %c2] : memref<32x9xf32, #tpu.memory_space<vmem>>, vector<8x1xf32>
    %27 = vector.broadcast %26 : vector<8x1xf32> to vector<8x128xf32>
    %28 = vector.broadcast %0 : vector<1x128xf32> to vector<8x128xf32>
    %29 = arith.mulf %27, %28 : vector<8x128xf32>
    %30 = vector.extract_strided_slice %25 {offsets = [0, 0], sizes = [8, 128], strides = [1, 1]} : vector<104x128xf32> to vector<8x128xf32>
    %31 = arith.addf %29, %30 : vector<8x128xf32>
    %c0_18 = arith.constant 0 : index
    %c3 = arith.constant 3 : index
    %32 = vector.load %arg8[%c0_18, %c3] : memref<32x9xf32, #tpu.memory_space<vmem>>, vector<8x1xf32>
    %33 = vector.broadcast %32 : vector<8x1xf32> to vector<8x128xf32>
    %34 = arith.addf %31, %33 : vector<8x128xf32>
    %cst_19 = arith.constant 5.000000e-01 : f32
    %35 = vector.broadcast %cst_19 : f32 to vector<8x128xf32>
    %36 = arith.mulf %35, %34 : vector<8x128xf32>
    %37 = math.tanh %36 : vector<8x128xf32>
    %cst_20 = arith.constant 1.000000e+00 : f32
    %38 = vector.broadcast %cst_20 : f32 to vector<8x128xf32>
    %39 = arith.addf %37, %38 : vector<8x128xf32>
    %cst_21 = arith.constant 5.000000e-01 : f32
    %40 = vector.broadcast %cst_21 : f32 to vector<8x128xf32>
    %41 = arith.mulf %40, %39 : vector<8x128xf32>
    %42 = arith.mulf %34, %41 : vector<8x128xf32>
    %c0_22 = arith.constant 0 : index
    %c0_23 = arith.constant 0 : index
    %43 = vector.load %arg5[%c0_22, %c0_23] : memref<32x8xf32, #tpu.memory_space<vmem>>, vector<32x8xf32>
    %cst_24 = arith.constant dense<0.000000e+00> : vector<32x128xf32>
    %44 = tpu.matmul %43, %42, %cst_24 {dimension_numbers = #tpu.dot_dimension_numbers<[1], [0], [0], [1], [0, 0, 1, 1], [], []>} : vector<32x8xf32>, vector<8x128xf32>, vector<32x128xf32> -> vector<32x128xf32>
    %45 = vector.extract_strided_slice %25 {offsets = [8, 0], sizes = [32, 128], strides = [1, 1]} : vector<104x128xf32> to vector<32x128xf32>
    %46 = arith.addf %44, %45 : vector<32x128xf32>
    %c0_25 = arith.constant 0 : index
    %c4 = arith.constant 4 : index
    %47 = vector.load %arg8[%c0_25, %c4] : memref<32x9xf32, #tpu.memory_space<vmem>>, vector<32x1xf32>
    %48 = vector.broadcast %47 : vector<32x1xf32> to vector<32x128xf32>
    %49 = arith.addf %46, %48 : vector<32x128xf32>
    %cst_26 = arith.constant 5.000000e-01 : f32
    %50 = vector.broadcast %cst_26 : f32 to vector<32x128xf32>
    %51 = arith.mulf %50, %49 : vector<32x128xf32>
    %52 = math.tanh %51 : vector<32x128xf32>
    %cst_27 = arith.constant 1.000000e+00 : f32
    %53 = vector.broadcast %cst_27 : f32 to vector<32x128xf32>
    %54 = arith.addf %52, %53 : vector<32x128xf32>
    %cst_28 = arith.constant 5.000000e-01 : f32
    %55 = vector.broadcast %cst_28 : f32 to vector<32x128xf32>
    %56 = arith.mulf %55, %54 : vector<32x128xf32>
    %57 = arith.mulf %49, %56 : vector<32x128xf32>
    %c0_29 = arith.constant 0 : index
    %c0_30 = arith.constant 0 : index
    %58 = vector.load %arg6[%c0_29, %c0_30] : memref<32x32xf32, #tpu.memory_space<vmem>>, vector<32x32xf32>
    %cst_31 = arith.constant dense<0.000000e+00> : vector<32x128xf32>
    %59 = tpu.matmul %58, %57, %cst_31 {dimension_numbers = #tpu.dot_dimension_numbers<[1], [0], [0], [1], [0, 0, 1, 1], [], []>} : vector<32x32xf32>, vector<32x128xf32>, vector<32x128xf32> -> vector<32x128xf32>
    %60 = vector.extract_strided_slice %25 {offsets = [40, 0], sizes = [32, 128], strides = [1, 1]} : vector<104x128xf32> to vector<32x128xf32>
    %61 = arith.addf %59, %60 : vector<32x128xf32>
    %c0_32 = arith.constant 0 : index
    %c5 = arith.constant 5 : index
    %62 = vector.load %arg8[%c0_32, %c5] : memref<32x9xf32, #tpu.memory_space<vmem>>, vector<32x1xf32>
    %63 = vector.broadcast %62 : vector<32x1xf32> to vector<32x128xf32>
    %64 = arith.addf %61, %63 : vector<32x128xf32>
    %cst_33 = arith.constant 5.000000e-01 : f32
    %65 = vector.broadcast %cst_33 : f32 to vector<32x128xf32>
    %66 = arith.mulf %65, %64 : vector<32x128xf32>
    %67 = math.tanh %66 : vector<32x128xf32>
    %cst_34 = arith.constant 1.000000e+00 : f32
    %68 = vector.broadcast %cst_34 : f32 to vector<32x128xf32>
    %69 = arith.addf %67, %68 : vector<32x128xf32>
    %cst_35 = arith.constant 5.000000e-01 : f32
    %70 = vector.broadcast %cst_35 : f32 to vector<32x128xf32>
    %71 = arith.mulf %70, %69 : vector<32x128xf32>
    %72 = arith.mulf %64, %71 : vector<32x128xf32>
    %c0_36 = arith.constant 0 : index
    %c0_37 = arith.constant 0 : index
    %73 = vector.load %arg7[%c0_36, %c0_37] : memref<32x32xf32, #tpu.memory_space<vmem>>, vector<32x32xf32>
    %cst_38 = arith.constant dense<0.000000e+00> : vector<32x128xf32>
    %74 = tpu.matmul %73, %72, %cst_38 {dimension_numbers = #tpu.dot_dimension_numbers<[1], [0], [0], [1], [0, 0, 1, 1], [], []>} : vector<32x32xf32>, vector<32x128xf32>, vector<32x128xf32> -> vector<32x128xf32>
    %75 = vector.extract_strided_slice %25 {offsets = [72, 0], sizes = [32, 128], strides = [1, 1]} : vector<104x128xf32> to vector<32x128xf32>
    %76 = arith.addf %74, %75 : vector<32x128xf32>
    %c0_39 = arith.constant 0 : index
    %c6 = arith.constant 6 : index
    %77 = vector.load %arg8[%c0_39, %c6] : memref<32x9xf32, #tpu.memory_space<vmem>>, vector<32x1xf32>
    %78 = vector.broadcast %77 : vector<32x1xf32> to vector<32x128xf32>
    %79 = arith.addf %76, %78 : vector<32x128xf32>
    %cst_40 = arith.constant 5.000000e-01 : f32
    %80 = vector.broadcast %cst_40 : f32 to vector<32x128xf32>
    %81 = arith.mulf %80, %79 : vector<32x128xf32>
    %82 = math.tanh %81 : vector<32x128xf32>
    %cst_41 = arith.constant 1.000000e+00 : f32
    %83 = vector.broadcast %cst_41 : f32 to vector<32x128xf32>
    %84 = arith.addf %82, %83 : vector<32x128xf32>
    %cst_42 = arith.constant 5.000000e-01 : f32
    %85 = vector.broadcast %cst_42 : f32 to vector<32x128xf32>
    %86 = arith.mulf %85, %84 : vector<32x128xf32>
    %87 = arith.mulf %79, %86 : vector<32x128xf32>
    %c0_43 = arith.constant 0 : index
    %c7 = arith.constant 7 : index
    %88 = vector.load %arg8[%c0_43, %c7] : memref<32x9xf32, #tpu.memory_space<vmem>>, vector<32x1xf32>
    %89 = vector.broadcast %88 : vector<32x1xf32> to vector<32x128xf32>
    %90 = arith.mulf %89, %87 : vector<32x128xf32>
    %cst_44 = arith.constant dense<0.000000e+00> : vector<128xf32>
    %91 = vector.multi_reduction <add>, %90, %cst_44 [0] : vector<32x128xf32> to vector<128xf32>
    %92 = vector.shape_cast %91 : vector<128xf32> to vector<1x128xf32>
    %c0_45 = arith.constant 0 : index
    %c8 = arith.constant 8 : index
    %93 = vector.load %arg8[%c0_45, %c8] : memref<32x9xf32, #tpu.memory_space<vmem>>, vector<1x1xf32>
    %94 = vector.broadcast %93 : vector<1x1xf32> to vector<1x128xf32>
    %95 = arith.addf %92, %94 : vector<1x128xf32>
    %c0_46 = arith.constant 0 : index
    %c0_47 = arith.constant 0 : index
    %96 = vector.load %arg9[%c0_46, %c0_47] : memref<1x128xf32, #tpu.memory_space<vmem>>, vector<1x128xf32>
    tpu.vector_store %arg9[%c0_46, %c0_47], %95 {strides = array<i32>} : memref<1x128xf32, #tpu.memory_space<vmem>>, vector<1x128xf32>,
    return
  }
  func.func @transform_0(%arg0: i32) -> (i32, i32) {
    %c0_i32 = arith.constant 0 : i32
    %c0_i32_0 = arith.constant 0 : i32
    return %c0_i32, %arg0 : i32, i32
  }
  func.func @transform_1(%arg0: i32) -> (i32, i32) {
    %c0_i32 = arith.constant 0 : i32
    %c0_i32_0 = arith.constant 0 : i32
    %c0_i32_1 = arith.constant 0 : i32
    return %c0_i32, %c0_i32_0 : i32, i32
  }
  func.func @transform_2(%arg0: i32) -> (i32, i32) {
    %c0_i32 = arith.constant 0 : i32
    %c0_i32_0 = arith.constant 0 : i32
    %c0_i32_1 = arith.constant 0 : i32
    return %c0_i32, %c0_i32_0 : i32, i32
  }
  func.func @transform_3(%arg0: i32) -> (i32, i32) {
    %c0_i32 = arith.constant 0 : i32
    %c0_i32_0 = arith.constant 0 : i32
    %c0_i32_1 = arith.constant 0 : i32
    return %c0_i32, %c0_i32_0 : i32, i32
  }
  func.func @transform_4(%arg0: i32) -> (i32, i32) {
    %c0_i32 = arith.constant 0 : i32
    %c0_i32_0 = arith.constant 0 : i32
    %c0_i32_1 = arith.constant 0 : i32
    return %c0_i32, %c0_i32_0 : i32, i32
  }
  func.func @transform_5(%arg0: i32) -> (i32, i32) {
    %c0_i32 = arith.constant 0 : i32
    %c0_i32_0 = arith.constant 0 : i32
    %c0_i32_1 = arith.constant 0 : i32
    return %c0_i32, %c0_i32_0 : i32, i32
  }
  func.func @transform_6(%arg0: i32) -> (i32, i32) {
    %c0_i32 = arith.constant 0 : i32
    %c0_i32_0 = arith.constant 0 : i32
    %c0_i32_1 = arith.constant 0 : i32
    return %c0_i32, %c0_i32_0 : i32, i32
  }
  func.func @transform_7(%arg0: i32) -> (i32, i32) {
    %c0_i32 = arith.constant 0 : i32
    %c0_i32_0 = arith.constant 0 : i32
    %c0_i32_1 = arith.constant 0 : i32
    return %c0_i32, %c0_i32_0 : i32, i32
  }
  func.func @transform_8(%arg0: i32) -> (i32, i32) {
    %c0_i32 = arith.constant 0 : i32
    %c0_i32_0 = arith.constant 0 : i32
    return %c0_i32, %arg0 : i32, i32
  }
}

</mosaic_0001>

<llo_original>
// kernel: tpu_custom_call.1
$region0: #{tpu_custom_call.1}
  #allocation0 [shape = 'u32[]', space=smem, size = 0x4, offset = 0x4, fixed_abs, tag = 'smem constant byte address 0x4 - core index']
  #allocation1 [shape = 'u32[144,128]{1,0:T(1,128)}', space=vmem, size = 0x12000, scoped, tag = 'internal scratch']
  %s0 = inlined_call_operand.vmem [shape: f32[2,128], index: 0, kind: input, shape index: {}]
  %s1 = inlined_call_operand.vmem [shape: f32[32,16], index: 1, kind: input, shape index: {}]
  %s2 = inlined_call_operand.vmem [shape: f32[32,16], index: 2, kind: input, shape index: {}]
  %s3 = inlined_call_operand.vmem [shape: f32[104,32], index: 3, kind: input, shape index: {}]
  %s4 = inlined_call_operand.vmem [shape: f32[32,8], index: 4, kind: input, shape index: {}]
  %s5 = inlined_call_operand.vmem [shape: f32[32,32], index: 5, kind: input, shape index: {}]
  %s6 = inlined_call_operand.vmem [shape: f32[32,32], index: 6, kind: input, shape index: {}]
  %s7 = inlined_call_operand.vmem [shape: f32[32,9], index: 7, kind: input, shape index: {}]
  %s8 = inlined_call_operand.hbm [shape: f32[1,128], index: 8, kind: output, shape index: {}]
  %s9 = sld [smem:[#allocation0]]
  $region42: #{tpu_custom_call.1} parent=0
    _
  %s11 = ssub.s32 1, %s9
  %s12 = scalar_select 0, %s11, %s9
  $region1: #{tpu_custom_call.1} parent=0
    #allocation2 [shape = 'u8[512]{0}', space=vmem, size = 0x400, scoped, tag = 'output window, operand 0, single buffered']
    #allocation3 [shape = 's32[1]{0}', space=sflag, size = 0x4, scoped, tag = 'scoped memory for tpu_custom_call.1']
    %13 = vsyncpa [#allocation3], 0
    // Predicated region
    $region2: #{tpu_custom_call.1} parent=1 // pred_check
      _
    $region3: #{tpu_custom_call.1} parent=1 // pred_check_branch
      %15 = sbr.rel (0) target = $region5
    $region4: #{tpu_custom_call.1} parent=1 // pred_region
      _
    $region5: #{tpu_custom_call.1} parent=1 // pred_fallthru
      _
    // Predicated region
    $region6: #{tpu_custom_call.1} parent=1 // pred_check
      _
    $region7: #{tpu_custom_call.1} parent=1 // pred_check_branch
      %17 = sbr.rel (0) target = $region9
    $region8: #{tpu_custom_call.1} parent=1 // pred_region
      _
    $region9: #{tpu_custom_call.1} parent=1 // pred_fallthru
      _
    // Predicated region
    $region10: #{tpu_custom_call.1} parent=1 // pred_check
      _
    $region11: #{tpu_custom_call.1} parent=1 // pred_check_branch
      %19 = sbr.rel (0) target = $region13
    $region12: #{tpu_custom_call.1} parent=1 // pred_region
      _
    $region13: #{tpu_custom_call.1} parent=1 // pred_fallthru
      _
    // Predicated region
    $region14: #{tpu_custom_call.1} parent=1 // pred_check
      _
    $region15: #{tpu_custom_call.1} parent=1 // pred_check_branch
      %21 = sbr.rel (0) target = $region17
    $region16: #{tpu_custom_call.1} parent=1 // pred_region
      _
    $region17: #{tpu_custom_call.1} parent=1 // pred_fallthru
      _
    // Predicated region
    $region18: #{tpu_custom_call.1} parent=1 // pred_check
      _
    $region19: #{tpu_custom_call.1} parent=1 // pred_check_branch
      %23 = sbr.rel (0) target = $region21
    $region20: #{tpu_custom_call.1} parent=1 // pred_region
      _
    $region21: #{tpu_custom_call.1} parent=1 // pred_fallthru
      _
    // Predicated region
    $region22: #{tpu_custom_call.1} parent=1 // pred_check
      _
    $region23: #{tpu_custom_call.1} parent=1 // pred_check_branch
      %25 = sbr.rel (0) target = $region25
    $region24: #{tpu_custom_call.1} parent=1 // pred_region
      _
    $region25: #{tpu_custom_call.1} parent=1 // pred_fallthru
      _
    // Predicated region
    $region26: #{tpu_custom_call.1} parent=1 // pred_check
      _
    $region27: #{tpu_custom_call.1} parent=1 // pred_check_branch
      %27 = sbr.rel (0) target = $region29
    $region28: #{tpu_custom_call.1} parent=1 // pred_region
      _
    $region29: #{tpu_custom_call.1} parent=1 // pred_fallthru
      _
    // Predicated region
    $region30: #{tpu_custom_call.1} parent=1 // pred_check
      _
    $region31: #{tpu_custom_call.1} parent=1 // pred_check_branch
      %29 = sbr.rel (0) target = $region33
    $region32: #{tpu_custom_call.1} parent=1 // pred_region
      _
    $region33: #{tpu_custom_call.1} parent=1 // pred_fallthru
      _
    %v30 = vld [vmem:[%s0] sm:$0x1]
    %v31 = vld [vmem:[%s0 + $0x1] sm:$0x1]
    %v32 = vld [vmem:[%s7] sm:$0xff]
    %v33 = vld [vmem:[%s7 + $0x8] sm:$0xff]
    %35 = vset.pattern.permute.xlu0 0
    %36 = vperm.xlu0 %35, %v32
    %v37 = vpop.permute.xlu0 %36
    %40 = vset.pattern.permute.xlu0 0
    %41 = vperm.xlu0 %40, %v33
    %v42 = vpop.permute.xlu0 %41
    %v44 = vlaneseq
    %v45 = vshrl.u32 %v44, 7
    %v46 = vsub.s32 0, %v45
    %v47 = vrot.slane %v31, %v46
    %v48 = vmul.f32 %v37, %v47
    %v49 = vmul.f32 %v42, %v47
    %v50 = vld [vmem:[%s1] sm:$0xff]
    %v51 = vld [vmem:[%s1 + $0x8] sm:$0xff]
    %v52 = vld [vmem:[%s1 + $0x10] sm:$0xff]
    %v53 = vld [vmem:[%s1 + $0x18] sm:$0xff]
    %v54 = vand.u32 2147483647, %v48
    %vm55 = vcmp.le.f32.partialorder %v54, 0.7853982
    %vm56 = vcmp.lt.s32.totalorder %v48, 0
    %v57 = vand.u32 %v48, 2139095040
    %v58 = vshrl.u32 %v57, 23
    %v59 = vsub.s32 %v58, 127
    %v60 = vand.u32 2147483647, %v48
    %v61 = vand.u32 %v60, 8388607
    %v62 = vor.u32 %v61, 8388608
    %v63 = vsub.s32 0, %v62
    %v64 = vadd.s32 %v59, 1
    %vm65 = vcmp.gt.s32.totalorder %v64, 0
    %v66 = vsel %vm65, %v64, 0
    %v67 = vshrl.u32 %v66, 5
    %v68 = vand.u32 %v66, 31
    %v69 = vsub.s32 32, %v68
    %v70 = vshrl.u32 683565275, %v69
    %v71 = vshll.u32 683565275, %v68
    %v72 = vshrl.u32 2475754826, %v69
    %v73 = vor.u32 %v71, %v72
    %v74 = vshll.u32 2475754826, %v68
    %v75 = vshrl.u32 2131351028, %v69
    %v76 = vor.u32 %v74, %v75
    %v77 = vshll.u32 2131351028, %v68
    %v78 = vshrl.u32 2102212464, %v69
    %v79 = vor.u32 %v77, %v78
    %v80 = vshll.u32 2102212464, %v68
    %v81 = vshrl.u32 920167782, %v69
    %v82 = vor.u32 %v80, %v81
    %v83 = vshll.u32 920167782, %v68
    %v84 = vshrl.u32 1326507024, %v69
    %v85 = vor.u32 %v83, %v84
    %vm86 = vcmp.lt.s32.totalorder %v67, 1
    %vm87 = vcmp.lt.s32.totalorder %v67, 2
    %vm88 = vcmp.lt.s32.totalorder %v67, 3
    %vm89 = vcmp.lt.s32.totalorder %v67, 4
    %v90 = vsel %vm86, %v70, %v73
    %v91 = vsel %vm89, %v79, 2102212464
    %v92 = vsel %vm88, %v76, %v91
    %v93 = vsel %vm87, %v90, %v92
    %v94 = vsel %vm86, %v73, %v76
    %v95 = vsel %vm89, %v82, 920167782
    %v96 = vsel %vm88, %v79, %v95
    %v97 = vsel %vm87, %v94, %v96
    %v98 = vsel %vm86, %v76, %v79
    %v99 = vsel %vm89, %v85, 1326507024
    %v100 = vsel %vm88, %v82, %v99
    %v101 = vsel %vm87, %v98, %v100
    %v102 = vshll.u32 %v62, 8
    %v103 = vmul.u32.u64.compose %v102, %v101
    %v104 = vextract.low.u32 %v103
    %v105 = vextract.high.u32 %v103
    %v106 = vmul.u32.u64.compose %v102, %v97
    %v107 = vextract.low.u32 %v106
    %v108 = vextract.high.u32 %v106
    %v109 = vmul.u32 %v102, %v93
    %v110 = vadd.s32 %v105, %v107
    %vm111 = vc.u32 %v105, %v107
    %v112 = vadd.s32 %v108, 1
    %v113 = vsel %vm111, %v112, %v108
    %v114 = vadd.s32 %v109, %v113
    %v115 = vadd.s32 %v114, 536870912
    %v116 = vshrl.u32 %v115, 30
    %v117 = vshll.u32 %v116, 30
    %v118 = vsub.s32 %v114, %v117
    %vm119 = vcmp.lt.s32.totalorder %v118, 0
    %v120 = vsub.s32 0, %v118
    %v121 = vsel %vm119, %v120, %v118
    %v122 = vclz %v121
    %v123 = vsub.s32 %v122, 2
    %vm124 = vcmp.gt.s32.totalorder 0, %v123
    %v125 = vsel %vm124, 0, %v123
    %v126 = vsub.s32 32, %v125
    %v127 = vshll.u32 %v118, %v125
    %v128 = vshrl.u32 %v110, %v126
    %v129 = vor.u32 %v127, %v128
    %v130 = vsub.s32 4294967266, %v125
    %v131 = vadd.s32 %v130, 127
    %v132 = vshll.u32 %v131, 23
    %v133 = vor.u32 4788187, %v132
    %v134 = vand.u32 2147483647, %v133
    %v136 = vcvt.s32.f32 %v129
    %v137 = vmul.f32 %v136, %v134
    %v138 = vxor.u32 %v137, 2147483648
    %v139 = vsel %vm56, %v138, %v137
    %v140 = vsub.s32 4, %v116
    %v141 = vsel %vm56, %v140, %v116
    %v142 = vsel %vm55, %v48, %v139
    %v143 = vsel %vm55, 0, %v141
    %v144 = vcosq.f32.pop %v142
    %v145 = vsinq.f32.pop %v142
    %vm146 = vweird.f32 %v48
    %v147 = vadd.s32 %v143, 3
    %v148 = vand.u32 %v147, 3
    %vm149 = vcmp.lt.s32.totalorder %v148, 2
    %vm150 = vcmp.eq.s32.totalorder %v148, 0
    %v151 = vxor.u32 %v145, 2147483648
    %v152 = vsel %vm150, %v144, %v151
    %vm153 = vcmp.eq.s32.totalorder %v148, 2
    %v154 = vxor.u32 %v144, 2147483648
    %v155 = vsel %vm153, %v154, %v145
    %v156 = vsel %vm149, %v152, %v155
    %v157 = vsel %vm146, nan, %v156
    %v158 = vand.u32 2147483647, %v49
    %vm159 = vcmp.le.f32.partialorder %v158, 0.7853982
    %vm160 = vcmp.lt.s32.totalorder %v49, 0
    %v161 = vand.u32 %v49, 2139095040
    %v162 = vshrl.u32 %v161, 23
    %v163 = vsub.s32 %v162, 127
    %v164 = vand.u32 2147483647, %v49
    %v165 = vand.u32 %v164, 8388607
    %v166 = vor.u32 %v165, 8388608
    %v167 = vsub.s32 0, %v166
    %v168 = vadd.s32 %v163, 1
    %vm169 = vcmp.gt.s32.totalorder %v168, 0
    %v170 = vsel %vm169, %v168, 0
    %v171 = vshrl.u32 %v170, 5
    %v172 = vand.u32 %v170, 31
    %v173 = vsub.s32 32, %v172
    %v174 = vshrl.u32 683565275, %v173
    %v175 = vshll.u32 683565275, %v172
    %v176 = vshrl.u32 2475754826, %v173
    %v177 = vor.u32 %v175, %v176
    %v178 = vshll.u32 2475754826, %v172
    %v179 = vshrl.u32 2131351028, %v173
    %v180 = vor.u32 %v178, %v179
    %v181 = vshll.u32 2131351028, %v172
    %v182 = vshrl.u32 2102212464, %v173
    %v183 = vor.u32 %v181, %v182
    %v184 = vshll.u32 2102212464, %v172
    %v185 = vshrl.u32 920167782, %v173
    %v186 = vor.u32 %v184, %v185
    %v187 = vshll.u32 920167782, %v172
    %v188 = vshrl.u32 1326507024, %v173
    %v189 = vor.u32 %v187, %v188
    %vm190 = vcmp.lt.s32.totalorder %v171, 1
    %vm191 = vcmp.lt.s32.totalorder %v171, 2
    %vm192 = vcmp.lt.s32.totalorder %v171, 3
    %vm193 = vcmp.lt.s32.totalorder %v171, 4
    %v194 = vsel %vm190, %v174, %v177
    %v195 = vsel %vm193, %v183, 2102212464
    %v196 = vsel %vm192, %v180, %v195
    %v197 = vsel %vm191, %v194, %v196
    %v198 = vsel %vm190, %v177, %v180
    %v199 = vsel %vm193, %v186, 920167782
    %v200 = vsel %vm192, %v183, %v199
    %v201 = vsel %vm191, %v198, %v200
    %v202 = vsel %vm190, %v180, %v183
    %v203 = vsel %vm193, %v189, 1326507024
    %v204 = vsel %vm192, %v186, %v203
    %v205 = vsel %vm191, %v202, %v204
    %v206 = vshll.u32 %v166, 8
    %v207 = vmul.u32.u64.compose %v206, %v205
    %v208 = vextract.low.u32 %v207
    %v209 = vextract.high.u32 %v207
    %v210 = vmul.u32.u64.compose %v206, %v201
    %v211 = vextract.low.u32 %v210
    %v212 = vextract.high.u32 %v210
    %v213 = vmul.u32 %v206, %v197
    %v214 = vadd.s32 %v209, %v211
    %vm215 = vc.u32 %v209, %v211
    %v216 = vadd.s32 %v212, 1
    %v217 = vsel %vm215, %v216, %v212
    %v218 = vadd.s32 %v213, %v217
    %v219 = vadd.s32 %v218, 536870912
    %v220 = vshrl.u32 %v219, 30
    %v221 = vshll.u32 %v220, 30
    %v222 = vsub.s32 %v218, %v221
    %vm223 = vcmp.lt.s32.totalorder %v222, 0
    %v224 = vsub.s32 0, %v222
    %v225 = vsel %vm223, %v224, %v222
    %v226 = vclz %v225
    %v227 = vsub.s32 %v226, 2
    %vm228 = vcmp.gt.s32.totalorder 0, %v227
    %v229 = vsel %vm228, 0, %v227
    %v230 = vsub.s32 32, %v229
    %v231 = vshll.u32 %v222, %v229
    %v232 = vshrl.u32 %v214, %v230
    %v233 = vor.u32 %v231, %v232
    %v234 = vsub.s32 4294967266, %v229
    %v235 = vadd.s32 %v234, 127
    %v236 = vshll.u32 %v235, 23
    %v237 = vor.u32 4788187, %v236
    %v238 = vand.u32 2147483647, %v237
    %v240 = vcvt.s32.f32 %v233
    %v241 = vmul.f32 %v240, %v238
    %v242 = vxor.u32 %v241, 2147483648
    %v243 = vsel %vm160, %v242, %v241
    %v244 = vsub.s32 4, %v220
    %v245 = vsel %vm160, %v244, %v220
    %v246 = vsel %vm159, %v49, %v243
    %v247 = vsel %vm159, 0, %v245
    %v248 = vcosq.f32.pop %v246
    %v249 = vsinq.f32.pop %v246
    %vm250 = vweird.f32 %v49
    %v251 = vadd.s32 %v247, 3
    %v252 = vand.u32 %v251, 3
    %vm253 = vcmp.lt.s32.totalorder %v252, 2
    %vm254 = vcmp.eq.s32.totalorder %v252, 0
    %v255 = vxor.u32 %v249, 2147483648
    %v256 = vsel %vm254, %v248, %v255
    %vm257 = vcmp.eq.s32.totalorder %v252, 2
    %v258 = vxor.u32 %v248, 2147483648
    %v259 = vsel %vm257, %v258, %v249
    %v260 = vsel %vm253, %v256, %v259
    %v261 = vsel %vm250, nan, %v260
    %v262 = vld [vmem:[%s2] sm:$0xff]
    %v263 = vld [vmem:[%s2 + $0x8] sm:$0xff]
    %v264 = vld [vmem:[%s2 + $0x10] sm:$0xff]
    %v265 = vld [vmem:[%s2 + $0x18] sm:$0xff]
    %v266 = vand.u32 2147483647, %v48
    %vm267 = vcmp.le.f32.partialorder %v266, 0.7853982
    %vm268 = vcmp.lt.s32.totalorder %v48, 0
    %v269 = vand.u32 %v48, 2139095040
    %v270 = vshrl.u32 %v269, 23
    %v271 = vsub.s32 %v270, 127
    %v272 = vand.u32 2147483647, %v48
    %v273 = vand.u32 %v272, 8388607
    %v274 = vor.u32 %v273, 8388608
    %v275 = vsub.s32 0, %v274
    %v276 = vadd.s32 %v271, 1
    %vm277 = vcmp.gt.s32.totalorder %v276, 0
    %v278 = vsel %vm277, %v276, 0
    %v279 = vshrl.u32 %v278, 5
    %v280 = vand.u32 %v278, 31
    %v281 = vsub.s32 32, %v280
    %v282 = vshrl.u32 683565275, %v281
    %v283 = vshll.u32 683565275, %v280
    %v284 = vshrl.u32 2475754826, %v281
    %v285 = vor.u32 %v283, %v284
    %v286 = vshll.u32 2475754826, %v280
    %v287 = vshrl.u32 2131351028, %v281
    %v288 = vor.u32 %v286, %v287
    %v289 = vshll.u32 2131351028, %v280
    %v290 = vshrl.u32 2102212464, %v281
    %v291 = vor.u32 %v289, %v290
    %v292 = vshll.u32 2102212464, %v280
    %v293 = vshrl.u32 920167782, %v281
    %v294 = vor.u32 %v292, %v293
    %v295 = vshll.u32 920167782, %v280
    %v296 = vshrl.u32 1326507024, %v281
    %v297 = vor.u32 %v295, %v296
    %vm298 = vcmp.lt.s32.totalorder %v279, 1
    %vm299 = vcmp.lt.s32.totalorder %v279, 2
    %vm300 = vcmp.lt.s32.totalorder %v279, 3
    %vm301 = vcmp.lt.s32.totalorder %v279, 4
    %v302 = vsel %vm298, %v282, %v285
    %v303 = vsel %vm301, %v291, 2102212464
    %v304 = vsel %vm300, %v288, %v303
    %v305 = vsel %vm299, %v302, %v304
    %v306 = vsel %vm298, %v285, %v288
    %v307 = vsel %vm301, %v294, 920167782
    %v308 = vsel %vm300, %v291, %v307
    %v309 = vsel %vm299, %v306, %v308
    %v310 = vsel %vm298, %v288, %v291
    %v311 = vsel %vm301, %v297, 1326507024
    %v312 = vsel %vm300, %v294, %v311
    %v313 = vsel %vm299, %v310, %v312
    %v314 = vshll.u32 %v274, 8
    %v315 = vmul.u32.u64.compose %v314, %v313
    %v316 = vextract.low.u32 %v315
    %v317 = vextract.high.u32 %v315
    %v318 = vmul.u32.u64.compose %v314, %v309
    %v319 = vextract.low.u32 %v318
    %v320 = vextract.high.u32 %v318
    %v321 = vmul.u32 %v314, %v305
    %v322 = vadd.s32 %v317, %v319
    %vm323 = vc.u32 %v317, %v319
    %v324 = vadd.s32 %v320, 1
    %v325 = vsel %vm323, %v324, %v320
    %v326 = vadd.s32 %v321, %v325
    %v327 = vadd.s32 %v326, 536870912
    %v328 = vshrl.u32 %v327, 30
    %v329 = vshll.u32 %v328, 30
    %v330 = vsub.s32 %v326, %v329
    %vm331 = vcmp.lt.s32.totalorder %v330, 0
    %v332 = vsub.s32 0, %v330
    %v333 = vsel %vm331, %v332, %v330
    %v334 = vclz %v333
    %v335 = vsub.s32 %v334, 2
    %vm336 = vcmp.gt.s32.totalorder 0, %v335
    %v337 = vsel %vm336, 0, %v335
    %v338 = vsub.s32 32, %v337
    %v339 = vshll.u32 %v330, %v337
    %v340 = vshrl.u32 %v322, %v338
    %v341 = vor.u32 %v339, %v340
    %v342 = vsub.s32 4294967266, %v337
    %v343 = vadd.s32 %v342, 127
    %v344 = vshll.u32 %v343, 23
    %v345 = vor.u32 4788187, %v344
    %v346 = vand.u32 2147483647, %v345
    %v348 = vcvt.s32.f32 %v341
    %v349 = vmul.f32 %v348, %v346
    %v350 = vxor.u32 %v349, 2147483648
    %v351 = vsel %vm268, %v350, %v349
    %v352 = vsub.s32 4, %v328
    %v353 = vsel %vm268, %v352, %v328
    %v354 = vsel %vm267, %v48, %v351
    %v355 = vsel %vm267, 0, %v353
    %v356 = vcosq.f32.pop %v354
    %v357 = vsinq.f32.pop %v354
    %vm358 = vweird.f32 %v48
    %v359 = vand.u32 %v355, 3
    %vm360 = vcmp.lt.s32.totalorder %v359, 2
    %vm361 = vcmp.eq.s32.totalorder %v359, 0
    %v362 = vxor.u32 %v357, 2147483648
    %v363 = vsel %vm361, %v356, %v362
    %vm364 = vcmp.eq.s32.totalorder %v359, 2
    %v365 = vxor.u32 %v356, 2147483648
    %v366 = vsel %vm364, %v365, %v357
    %v367 = vsel %vm360, %v363, %v366
    %v368 = vsel %vm358, nan, %v367
    %v369 = vand.u32 2147483647, %v49
    %vm370 = vcmp.le.f32.partialorder %v369, 0.7853982
    %vm371 = vcmp.lt.s32.totalorder %v49, 0
    %v372 = vand.u32 %v49, 2139095040
    %v373 = vshrl.u32 %v372, 23
    %v374 = vsub.s32 %v373, 127
    %v375 = vand.u32 2147483647, %v49
    %v376 = vand.u32 %v375, 8388607
    %v377 = vor.u32 %v376, 8388608
    %v378 = vsub.s32 0, %v377
    %v379 = vadd.s32 %v374, 1
    %vm380 = vcmp.gt.s32.totalorder %v379, 0
    %v381 = vsel %vm380, %v379, 0
    %v382 = vshrl.u32 %v381, 5
    %v383 = vand.u32 %v381, 31
    %v384 = vsub.s32 32, %v383
    %v385 = vshrl.u32 683565275, %v384
    %v386 = vshll.u32 683565275, %v383
    %v387 = vshrl.u32 2475754826, %v384
    %v388 = vor.u32 %v386, %v387
    %v389 = vshll.u32 2475754826, %v383
    %v390 = vshrl.u32 2131351028, %v384
    %v391 = vor.u32 %v389, %v390
    %v392 = vshll.u32 2131351028, %v383
    %v393 = vshrl.u32 2102212464, %v384
    %v394 = vor.u32 %v392, %v393
    %v395 = vshll.u32 2102212464, %v383
    %v396 = vshrl.u32 920167782, %v384
    %v397 = vor.u32 %v395, %v396
    %v398 = vshll.u32 920167782, %v383
    %v399 = vshrl.u32 1326507024, %v384
    %v400 = vor.u32 %v398, %v399
    %vm401 = vcmp.lt.s32.totalorder %v382, 1
    %vm402 = vcmp.lt.s32.totalorder %v382, 2
    %vm403 = vcmp.lt.s32.totalorder %v382, 3
    %vm404 = vcmp.lt.s32.totalorder %v382, 4
    %v405 = vsel %vm401, %v385, %v388
    %v406 = vsel %vm404, %v394, 2102212464
    %v407 = vsel %vm403, %v391, %v406
    %v408 = vsel %vm402, %v405, %v407
    %v409 = vsel %vm401, %v388, %v391
    %v410 = vsel %vm404, %v397, 920167782
    %v411 = vsel %vm403, %v394, %v410
    %v412 = vsel %vm402, %v409, %v411
    %v413 = vsel %vm401, %v391, %v394
    %v414 = vsel %vm404, %v400, 1326507024
    %v415 = vsel %vm403, %v397, %v414
    %v416 = vsel %vm402, %v413, %v415
    %v417 = vshll.u32 %v377, 8
    %v418 = vmul.u32.u64.compose %v417, %v416
    %v419 = vextract.low.u32 %v418
    %v420 = vextract.high.u32 %v418
    %v421 = vmul.u32.u64.compose %v417, %v412
    %v422 = vextract.low.u32 %v421
    %v423 = vextract.high.u32 %v421
    %v424 = vmul.u32 %v417, %v408
    %v425 = vadd.s32 %v420, %v422
    %vm426 = vc.u32 %v420, %v422
    %v427 = vadd.s32 %v423, 1
    %v428 = vsel %vm426, %v427, %v423
    %v429 = vadd.s32 %v424, %v428
    %v430 = vadd.s32 %v429, 536870912
    %v431 = vshrl.u32 %v430, 30
    %v432 = vshll.u32 %v431, 30
    %v433 = vsub.s32 %v429, %v432
    %vm434 = vcmp.lt.s32.totalorder %v433, 0
    %v435 = vsub.s32 0, %v433
    %v436 = vsel %vm434, %v435, %v433
    %v437 = vclz %v436
    %v438 = vsub.s32 %v437, 2
    %vm439 = vcmp.gt.s32.totalorder 0, %v438
    %v440 = vsel %vm439, 0, %v438
    %v441 = vsub.s32 32, %v440
    %v442 = vshll.u32 %v433, %v440
    %v443 = vshrl.u32 %v425, %v441
    %v444 = vor.u32 %v442, %v443
    %v445 = vsub.s32 4294967266, %v440
    %v446 = vadd.s32 %v445, 127
    %v447 = vshll.u32 %v446, 23
    %v448 = vor.u32 4788187, %v447
    %v449 = vand.u32 2147483647, %v448
    %v451 = vcvt.s32.f32 %v444
    %v452 = vmul.f32 %v451, %v449
    %v453 = vxor.u32 %v452, 2147483648
    %v454 = vsel %vm371, %v453, %v452
    %v455 = vsub.s32 4, %v431
    %v456 = vsel %vm371, %v455, %v431
    %v457 = vsel %vm370, %v49, %v454
    %v458 = vsel %vm370, 0, %v456
    %v459 = vcosq.f32.pop %v457
    %v460 = vsinq.f32.pop %v457
    %vm461 = vweird.f32 %v49
    %v462 = vand.u32 %v458, 3
    %vm463 = vcmp.lt.s32.totalorder %v462, 2
    %vm464 = vcmp.eq.s32.totalorder %v462, 0
    %v465 = vxor.u32 %v460, 2147483648
    %v466 = vsel %vm464, %v459, %v465
    %vm467 = vcmp.eq.s32.totalorder %v462, 2
    %v468 = vxor.u32 %v459, 2147483648
    %v469 = vsel %vm467, %v468, %v460
    %v470 = vsel %vm463, %v466, %v469
    %v471 = vsel %vm461, nan, %v470
    %vm472 = vcmask 130048
    %v474 = vsel %vm472, %v262, 0
    %v477 = vsel %vm472, %v263, 0
    %v480 = vsel %vm472, %v264, 0
    %v483 = vsel %vm472, %v265, 0
    %485 = vmatprep.subr.mxu0 0.0
    %486 = vmatpush1.msra.mxu0 %v368
    %487 = vmatprep.subr.mxu0 0.0
    %488 = vmatpush1.msra.mxu0 %v471
    %489 = vmatprep.subr.mxu0 0.0
    %490 = vmatpush1.msra.mxu0 0.0
    %491 = vmatprep.subr.mxu0 0.0
    %492 = vmatpush1.msra.mxu0 0.0
    %493 = vmatprep.subr.mxu0 0.0
    %494 = vmatpush1.msra.mxu0 0.0
    %495 = vmatprep.subr.mxu0 0.0
    %496 = vmatpush1.msra.mxu0 0.0
    %497 = vmatprep.subr.mxu0 0.0
    %498 = vmatpush1.msra.mxu0 0.0
    %499 = vmatprep.subr.mxu0 0.0
    %500 = vmatpush1.msra.mxu0 0.0
    %501 = vmatprep.subr.mxu0 0.0
    %502 = vmatpush1.msra.mxu0 0.0
    %503 = vmatprep.subr.mxu0 0.0
    %504 = vmatpush1.msra.mxu0 0.0
    %505 = vmatprep.subr.mxu0 0.0
    %506 = vmatpush1.msra.mxu0 0.0
    %507 = vmatprep.subr.mxu0 0.0
    %508 = vmatpush1.msra.mxu0 0.0
    %509 = vmatprep.subr.mxu0 0.0
    %510 = vmatpush1.msra.mxu0 0.0
    %511 = vmatprep.subr.mxu0 0.0
    %512 = vmatpush1.msra.mxu0 0.0
    %513 = vmatprep.subr.mxu0 0.0
    %514 = vmatpush1.msra.mxu0 0.0
    %515 = vmatprep.subr.mxu0 0.0
    %516 = vmatpush1.msra.mxu0 0.0
    %517 = vmatprep.subr.mxu0 0.0
    %518 = vmatpush1.msra.mxu0 0.0
    %519 = vmatprep.subr.mxu0 0.0
    %520 = vmatpush1.msra.mxu0 0.0
    %521 = vmatprep.subr.mxu0 0.0
    %522 = vmatpush1.msra.mxu0 0.0
    %523 = vmatprep.subr.mxu0 0.0
    %524 = vmatpush1.msra.mxu0 0.0
    %525 = vmatprep.subr.mxu0 0.0
    %526 = vmatpush1.msra.mxu0 0.0
    %527 = vmatprep.subr.mxu0 0.0
    %528 = vmatpush1.msra.mxu0 0.0
    %529 = vmatprep.subr.mxu0 0.0
    %530 = vmatpush1.msra.mxu0 0.0
    %531 = vmatprep.subr.mxu0 0.0
    %532 = vmatpush1.msra.mxu0 0.0
    %533 = vmatprep.subr.mxu0 0.0
    %534 = vmatpush1.msra.mxu0 0.0
    %535 = vmatprep.subr.mxu0 0.0
    %536 = vmatpush1.msra.mxu0 0.0
    %537 = vmatprep.subr.mxu0 0.0
    %538 = vmatpush1.msra.mxu0 0.0
    %539 = vmatprep.subr.mxu0 0.0
    %540 = vmatpush1.msra.mxu0 0.0
    %541 = vmatprep.subr.mxu0 0.0
    %542 = vmatpush1.msra.mxu0 0.0
    %543 = vmatprep.subr.mxu0 0.0
    %544 = vmatpush1.msra.mxu0 0.0
    %545 = vmatprep.subr.mxu0 0.0
    %546 = vmatpush1.msra.mxu0 0.0
    %547 = vmatprep.subr.mxu0 0.0
    %548 = vmatpush1.msra.mxu0 0.0
    %549 = vmatprep.mubr.f32.mxu0 0.0
    %550 = vmatmul.mubr.f32.gmra.mrb[0].mxu0 %v474
    %v551 = vpop.f32.mrb[0].mxu0
    %v552 = vadd.f32 0.0, %v551
    %v553 = vpop.f32.mrb[0].mxu0
    %554 = vmatprep.mubr.f32.mxu0 0.0
    %555 = vmatmul.mubr.f32.gmra.mrb[0].mxu0 %v477
    %v556 = vpop.f32.mrb[0].mxu0
    %v557 = vadd.f32 0.0, %v556
    %v558 = vpop.f32.mrb[0].mxu0
    %559 = vmatprep.mubr.f32.mxu0 0.0
    %560 = vmatmul.mubr.f32.gmra.mrb[0].mxu0 %v480
    %v561 = vpop.f32.mrb[0].mxu0
    %v562 = vadd.f32 0.0, %v561
    %v563 = vpop.f32.mrb[0].mxu0
    %564 = vmatprep.mubr.f32.mxu0 0.0
    %565 = vmatmul.mubr.f32.gmra.mrb[0].mxu0 %v483
    %v566 = vpop.f32.mrb[0].mxu0
    %v567 = vadd.f32 0.0, %v566
    %v568 = vpop.f32.mrb[0].mxu0
    %569 = vdwg.mxu0
    %v571 = vsel %vm472, %v50, 0
    %v574 = vsel %vm472, %v51, 0
    %v577 = vsel %vm472, %v52, 0
    %v580 = vsel %vm472, %v53, 0
    %582 = vmatprep.subr.mxu0 0.0
    %583 = vmatpush1.msra.mxu0 %v157
    %584 = vmatprep.subr.mxu0 0.0
    %585 = vmatpush1.msra.mxu0 %v261
    %586 = vmatprep.subr.mxu0 0.0
    %587 = vmatpush1.msra.mxu0 0.0
    %588 = vmatprep.subr.mxu0 0.0
    %589 = vmatpush1.msra.mxu0 0.0
    %590 = vmatprep.subr.mxu0 0.0
    %591 = vmatpush1.msra.mxu0 0.0
    %592 = vmatprep.subr.mxu0 0.0
    %593 = vmatpush1.msra.mxu0 0.0
    %594 = vmatprep.subr.mxu0 0.0
    %595 = vmatpush1.msra.mxu0 0.0
    %596 = vmatprep.subr.mxu0 0.0
    %597 = vmatpush1.msra.mxu0 0.0
    %598 = vmatprep.subr.mxu0 0.0
    %599 = vmatpush1.msra.mxu0 0.0
    %600 = vmatprep.subr.mxu0 0.0
    %601 = vmatpush1.msra.mxu0 0.0
    %602 = vmatprep.subr.mxu0 0.0
    %603 = vmatpush1.msra.mxu0 0.0
    %604 = vmatprep.subr.mxu0 0.0
    %605 = vmatpush1.msra.mxu0 0.0
    %606 = vmatprep.subr.mxu0 0.0
    %607 = vmatpush1.msra.mxu0 0.0
    %608 = vmatprep.subr.mxu0 0.0
    %609 = vmatpush1.msra.mxu0 0.0
    %610 = vmatprep.subr.mxu0 0.0
    %611 = vmatpush1.msra.mxu0 0.0
    %612 = vmatprep.subr.mxu0 0.0
    %613 = vmatpush1.msra.mxu0 0.0
    %614 = vmatprep.subr.mxu0 0.0
    %615 = vmatpush1.msra.mxu0 0.0
    %616 = vmatprep.subr.mxu0 0.0
    %617 = vmatpush1.msra.mxu0 0.0
    %618 = vmatprep.subr.mxu0 0.0
    %619 = vmatpush1.msra.mxu0 0.0
    %620 = vmatprep.subr.mxu0 0.0
    %621 = vmatpush1.msra.mxu0 0.0
    %622 = vmatprep.subr.mxu0 0.0
    %623 = vmatpush1.msra.mxu0 0.0
    %624 = vmatprep.subr.mxu0 0.0
    %625 = vmatpush1.msra.mxu0 0.0
    %626 = vmatprep.subr.mxu0 0.0
    %627 = vmatpush1.msra.mxu0 0.0
    %628 = vmatprep.subr.mxu0 0.0
    %629 = vmatpush1.msra.mxu0 0.0
    %630 = vmatprep.subr.mxu0 0.0
    %631 = vmatpush1.msra.mxu0 0.0
    %632 = vmatprep.subr.mxu0 0.0
    %633 = vmatpush1.msra.mxu0 0.0
    %634 = vmatprep.subr.mxu0 0.0
    %635 = vmatpush1.msra.mxu0 0.0
    %636 = vmatprep.subr.mxu0 0.0
    %637 = vmatpush1.msra.mxu0 0.0
    %638 = vmatprep.subr.mxu0 0.0
    %639 = vmatpush1.msra.mxu0 0.0
    %640 = vmatprep.subr.mxu0 0.0
    %641 = vmatpush1.msra.mxu0 0.0
    %642 = vmatprep.subr.mxu0 0.0
    %643 = vmatpush1.msra.mxu0 0.0
    %644 = vmatprep.subr.mxu0 0.0
    %645 = vmatpush1.msra.mxu0 0.0
    %646 = vmatprep.mubr.f32.mxu0 0.0
    %647 = vmatmul.mubr.f32.gmra.mrb[0].mxu0 %v571
    %v648 = vpop.f32.mrb[0].mxu0
    %v649 = vadd.f32 %v552, %v648
    %v650 = vpop.f32.mrb[0].mxu0
    %651 = vmatprep.mubr.f32.mxu0 0.0
    %652 = vmatmul.mubr.f32.gmra.mrb[0].mxu0 %v574
    %v653 = vpop.f32.mrb[0].mxu0
    %v654 = vadd.f32 %v557, %v653
    %v655 = vpop.f32.mrb[0].mxu0
    %656 = vmatprep.mubr.f32.mxu0 0.0
    %657 = vmatmul.mubr.f32.gmra.mrb[0].mxu0 %v577
    %v658 = vpop.f32.mrb[0].mxu0
    %v659 = vadd.f32 %v562, %v658
    %v660 = vpop.f32.mrb[0].mxu0
    %661 = vmatprep.mubr.f32.mxu0 0.0
    %662 = vmatmul.mubr.f32.gmra.mrb[0].mxu0 %v580
    %v663 = vpop.f32.mrb[0].mxu0
    %v664 = vadd.f32 %v567, %v663
    %v665 = vpop.f32.mrb[0].mxu0
    %666 = vdwg.mxu0
    %v667 = vld [vmem:[%s7] sm:$0xff]
    %v668 = vld [vmem:[%s7 + $0x8] sm:$0xff]
    %v669 = vld [vmem:[%s7 + $0x10] sm:$0xff]
    %v670 = vld [vmem:[%s7 + $0x18] sm:$0xff]
    %672 = vset.pattern.permute.xlu0 1
    %673 = vperm.xlu0 %672, %v667
    %v674 = vpop.permute.xlu0 %673
    %677 = vset.pattern.permute.xlu0 1
    %678 = vperm.xlu0 %677, %v668
    %v679 = vpop.permute.xlu0 %678
    %682 = vset.pattern.permute.xlu0 1
    %683 = vperm.xlu0 %682, %v669
    %v684 = vpop.permute.xlu0 %683
    %687 = vset.pattern.permute.xlu0 1
    %688 = vperm.xlu0 %687, %v670
    %v689 = vpop.permute.xlu0 %688
    %v691 = vadd.f32 %v649, %v674
    %v692 = vadd.f32 %v654, %v679
    %v693 = vadd.f32 %v659, %v684
    %v694 = vadd.f32 %v664, %v689
    %v695 = vmul.f32 %v691, 0.5
    %v696 = vmul.f32 %v692, 0.5
    %v697 = vmul.f32 %v693, 0.5
    %v698 = vmul.f32 %v694, 0.5
    %v699 = vtanh.pop %v695
    %v700 = vtanh.pop %v696
    %v701 = vtanh.pop %v697
    %v702 = vtanh.pop %v698
    %v703 = vadd.f32 %v699, 1.0
    %v704 = vadd.f32 %v700, 1.0
    %v705 = vadd.f32 %v701, 1.0
    %v706 = vadd.f32 %v702, 1.0
    %v707 = vmul.f32 %v703, 0.5
    %v708 = vmul.f32 %v704, 0.5
    %v709 = vmul.f32 %v705, 0.5
    %v710 = vmul.f32 %v706, 0.5
    %v711 = vmul.f32 %v691, %v707
    %v712 = vmul.f32 %v692, %v708
    %v713 = vmul.f32 %v693, %v709
    %v714 = vmul.f32 %v694, %v710
    %v715 = vld [vmem:[%s3] sm:$0xff]
    %v716 = vld [vmem:[%s3 + $0x8] sm:$0xff]
    %v717 = vld [vmem:[%s3 + $0x10] sm:$0xff]
    %v718 = vld [vmem:[%s3 + $0x18] sm:$0xff]
    %v719 = vld [vmem:[%s3 + $0x20] sm:$0xff]
    %v720 = vld [vmem:[%s3 + $0x28] sm:$0xff]
    %v721 = vld [vmem:[%s3 + $0x30] sm:$0xff]
    %v722 = vld [vmem:[%s3 + $0x38] sm:$0xff]
    %v723 = vld [vmem:[%s3 + $0x40] sm:$0xff]
    %v724 = vld [vmem:[%s3 + $0x48] sm:$0xff]
    %v725 = vld [vmem:[%s3 + $0x50] sm:$0xff]
    %v726 = vld [vmem:[%s3 + $0x58] sm:$0xff]
    %v727 = vld [vmem:[%s3 + $0x60] sm:$0xff]
    %vm728 = vcmask 261120
    %v730 = vsel %vm728, %v715, 0
    %v733 = vsel %vm728, %v716, 0
    %v736 = vsel %vm728, %v717, 0
    %v739 = vsel %vm728, %v718, 0
    %v742 = vsel %vm728, %v719, 0
    %v745 = vsel %vm728, %v720, 0
    %v748 = vsel %vm728, %v721, 0
    %v751 = vsel %vm728, %v722, 0
    %v754 = vsel %vm728, %v723, 0
    %v757 = vsel %vm728, %v724, 0
    %v760 = vsel %vm728, %v725, 0
    %v763 = vsel %vm728, %v726, 0
    %v766 = vsel %vm728, %v727, 0
    %768 = vmatprep.subr.mxu0 0.0
    %769 = vmatpush1.msra.mxu0 %v711
    %770 = vmatprep.subr.mxu0 0.0
    %771 = vmatpush1.msra.mxu0 %v712
    %772 = vmatprep.subr.mxu0 0.0
    %773 = vmatpush1.msra.mxu0 %v713
    %774 = vmatprep.subr.mxu0 0.0
    %775 = vmatpush1.msra.mxu0 %v714
    %776 = vmatprep.subr.mxu0 0.0
    %777 = vmatpush1.msra.mxu0 0.0
    %778 = vmatprep.subr.mxu0 0.0
    %779 = vmatpush1.msra.mxu0 0.0
    %780 = vmatprep.subr.mxu0 0.0
    %781 = vmatpush1.msra.mxu0 0.0
    %782 = vmatprep.subr.mxu0 0.0
    %783 = vmatpush1.msra.mxu0 0.0
    %784 = vmatprep.subr.mxu0 0.0
    %785 = vmatpush1.msra.mxu0 0.0
    %786 = vmatprep.subr.mxu0 0.0
    %787 = vmatpush1.msra.mxu0 0.0
    %788 = vmatprep.subr.mxu0 0.0
    %789 = vmatpush1.msra.mxu0 0.0
    %790 = vmatprep.subr.mxu0 0.0
    %791 = vmatpush1.msra.mxu0 0.0
    %792 = vmatprep.subr.mxu0 0.0
    %793 = vmatpush1.msra.mxu0 0.0
    %794 = vmatprep.subr.mxu0 0.0
    %795 = vmatpush1.msra.mxu0 0.0
    %796 = vmatprep.subr.mxu0 0.0
    %797 = vmatpush1.msra.mxu0 0.0
    %798 = vmatprep.subr.mxu0 0.0
    %799 = vmatpush1.msra.mxu0 0.0
    %800 = vmatprep.subr.mxu0 0.0
    %801 = vmatpush1.msra.mxu0 0.0
    %802 = vmatprep.subr.mxu0 0.0
    %803 = vmatpush1.msra.mxu0 0.0
    %804 = vmatprep.subr.mxu0 0.0
    %805 = vmatpush1.msra.mxu0 0.0
    %806 = vmatprep.subr.mxu0 0.0
    %807 = vmatpush1.msra.mxu0 0.0
    %808 = vmatprep.subr.mxu0 0.0
    %809 = vmatpush1.msra.mxu0 0.0
    %810 = vmatprep.subr.mxu0 0.0
    %811 = vmatpush1.msra.mxu0 0.0
    %812 = vmatprep.subr.mxu0 0.0
    %813 = vmatpush1.msra.mxu0 0.0
    %814 = vmatprep.subr.mxu0 0.0
    %815 = vmatpush1.msra.mxu0 0.0
    %816 = vmatprep.subr.mxu0 0.0
    %817 = vmatpush1.msra.mxu0 0.0
    %818 = vmatprep.subr.mxu0 0.0
    %819 = vmatpush1.msra.mxu0 0.0
    %820 = vmatprep.subr.mxu0 0.0
    %821 = vmatpush1.msra.mxu0 0.0
    %822 = vmatprep.subr.mxu0 0.0
    %823 = vmatpush1.msra.mxu0 0.0
    %824 = vmatprep.subr.mxu0 0.0
    %825 = vmatpush1.msra.mxu0 0.0
    %826 = vmatprep.subr.mxu0 0.0
    %827 = vmatpush1.msra.mxu0 0.0
    %828 = vmatprep.subr.mxu0 0.0
    %829 = vmatpush1.msra.mxu0 0.0
    %830 = vmatprep.subr.mxu0 0.0
    %831 = vmatpush1.msra.mxu0 0.0
    %832 = vmatprep.mubr.f32.mxu0 0.0
    %833 = vmatmul.mubr.f32.gmra.mrb[0].mxu0 %v730
    %v834 = vpop.f32.mrb[0].mxu0
    %v835 = vadd.f32 0.0, %v834
    %v836 = vpop.f32.mrb[0].mxu0
    %837 = vmatprep.mubr.f32.mxu0 0.0
    %838 = vmatmul.mubr.f32.gmra.mrb[0].mxu0 %v733
    %v839 = vpop.f32.mrb[0].mxu0
    %v840 = vadd.f32 0.0, %v839
    %v841 = vpop.f32.mrb[0].mxu0
    %842 = vmatprep.mubr.f32.mxu0 0.0
    %843 = vmatmul.mubr.f32.gmra.mrb[0].mxu0 %v736
    %v844 = vpop.f32.mrb[0].mxu0
    %v845 = vadd.f32 0.0, %v844
    %v846 = vpop.f32.mrb[0].mxu0
    %847 = vmatprep.mubr.f32.mxu0 0.0
    %848 = vmatmul.mubr.f32.gmra.mrb[0].mxu0 %v739
    %v849 = vpop.f32.mrb[0].mxu0
    %v850 = vadd.f32 0.0, %v849
    %v851 = vpop.f32.mrb[0].mxu0
    %852 = vmatprep.mubr.f32.mxu0 0.0
    %853 = vmatmul.mubr.f32.gmra.mrb[0].mxu0 %v742
    %v854 = vpop.f32.mrb[0].mxu0
    %v855 = vadd.f32 0.0, %v854
    %v856 = vpop.f32.mrb[0].mxu0
    %857 = vmatprep.mubr.f32.mxu0 0.0
    %858 = vmatmul.mubr.f32.gmra.mrb[0].mxu0 %v745
    %v859 = vpop.f32.mrb[0].mxu0
    %v860 = vadd.f32 0.0, %v859
    %v861 = vpop.f32.mrb[0].mxu0
    %862 = vmatprep.mubr.f32.mxu0 0.0
    %863 = vmatmul.mubr.f32.gmra.mrb[0].mxu0 %v748
    %v864 = vpop.f32.mrb[0].mxu0
    %v865 = vadd.f32 0.0, %v864
    %v866 = vpop.f32.mrb[0].mxu0
    %867 = vmatprep.mubr.f32.mxu0 0.0
    %868 = vmatmul.mubr.f32.gmra.mrb[0].mxu0 %v751
    %v869 = vpop.f32.mrb[0].mxu0
    %v870 = vadd.f32 0.0, %v869
    %v871 = vpop.f32.mrb[0].mxu0
    %872 = vmatprep.mubr.f32.mxu0 0.0
    %873 = vmatmul.mubr.f32.gmra.mrb[0].mxu0 %v754
    %v874 = vpop.f32.mrb[0].mxu0
    %v875 = vadd.f32 0.0, %v874
    %v876 = vpop.f32.mrb[0].mxu0
    %877 = vmatprep.mubr.f32.mxu0 0.0
    %878 = vmatmul.mubr.f32.gmra.mrb[0].mxu0 %v757
    %v879 = vpop.f32.mrb[0].mxu0
    %v880 = vadd.f32 0.0, %v879
    %v881 = vpop.f32.mrb[0].mxu0
    %882 = vmatprep.mubr.f32.mxu0 0.0
    %883 = vmatmul.mubr.f32.gmra.mrb[0].mxu0 %v760
    %v884 = vpop.f32.mrb[0].mxu0
    %v885 = vadd.f32 0.0, %v884
    %v886 = vpop.f32.mrb[0].mxu0
    %887 = vmatprep.mubr.f32.mxu0 0.0
    %888 = vmatmul.mubr.f32.gmra.mrb[0].mxu0 %v763
    %v889 = vpop.f32.mrb[0].mxu0
    %v890 = vadd.f32 0.0, %v889
    %v891 = vpop.f32.mrb[0].mxu0
    %892 = vmatprep.mubr.f32.mxu0 0.0
    %893 = vmatmul.mubr.f32.gmra.mrb[0].mxu0 %v766
    %v894 = vpop.f32.mrb[0].mxu0
    %v895 = vadd.f32 0.0, %v894
    %v896 = vpop.f32.mrb[0].mxu0
    %897 = vdwg.mxu0
    %v898 = vld [vmem:[%s7] sm:$0xff]
    %900 = vset.pattern.permute.xlu0 2
    %901 = vperm.xlu0 %900, %v898
    %v902 = vpop.permute.xlu0 %901
    %v904 = vlaneseq
    %v905 = vshrl.u32 %v904, 7
    %v906 = vsub.s32 0, %v905
    %v907 = vrot.slane %v30, %v906
    %v908 = vmul.f32 %v902, %v907
    %v909 = vadd.f32 %v908, %v835
    %910 = vset.pattern.permute.xlu0 3
    %911 = vperm.xlu0 %910, %v898
    %v912 = vpop.permute.xlu0 %911
    %v914 = vadd.f32 %v909, %v912
    %v915 = vmul.f32 %v914, 0.5
    %v916 = vtanh.pop %v915
    %v917 = vadd.f32 %v916, 1.0
    %v918 = vmul.f32 %v917, 0.5
    %v919 = vmul.f32 %v914, %v918
    %v920 = vld [vmem:[%s4] sm:$0xff]
    %v921 = vld [vmem:[%s4 + $0x8] sm:$0xff]
    %v922 = vld [vmem:[%s4 + $0x10] sm:$0xff]
    %v923 = vld [vmem:[%s4 + $0x18] sm:$0xff]
    %vm924 = vcmask 64512
    %v926 = vsel %vm924, %v920, 0
    %v929 = vsel %vm924, %v921, 0
    %v932 = vsel %vm924, %v922, 0
    %v935 = vsel %vm924, %v923, 0
    %937 = vmatprep.subr.mxu0 0.0
    %938 = vmatpush1.msra.mxu0 %v919
    %939 = vmatprep.subr.mxu0 0.0
    %940 = vmatpush1.msra.mxu0 0.0
    %941 = vmatprep.subr.mxu0 0.0
    %942 = vmatpush1.msra.mxu0 0.0
    %943 = vmatprep.subr.mxu0 0.0
    %944 = vmatpush1.msra.mxu0 0.0
    %945 = vmatprep.subr.mxu0 0.0
    %946 = vmatpush1.msra.mxu0 0.0
    %947 = vmatprep.subr.mxu0 0.0
    %948 = vmatpush1.msra.mxu0 0.0
    %949 = vmatprep.subr.mxu0 0.0
    %950 = vmatpush1.msra.mxu0 0.0
    %951 = vmatprep.subr.mxu0 0.0
    %952 = vmatpush1.msra.mxu0 0.0
    %953 = vmatprep.subr.mxu0 0.0
    %954 = vmatpush1.msra.mxu0 0.0
    %955 = vmatprep.subr.mxu0 0.0
    %956 = vmatpush1.msra.mxu0 0.0
    %957 = vmatprep.subr.mxu0 0.0
    %958 = vmatpush1.msra.mxu0 0.0
    %959 = vmatprep.subr.mxu0 0.0
    %960 = vmatpush1.msra.mxu0 0.0
    %961 = vmatprep.subr.mxu0 0.0
    %962 = vmatpush1.msra.mxu0 0.0
    %963 = vmatprep.subr.mxu0 0.0
    %964 = vmatpush1.msra.mxu0 0.0
    %965 = vmatprep.subr.mxu0 0.0
    %966 = vmatpush1.msra.mxu0 0.0
    %967 = vmatprep.subr.mxu0 0.0
    %968 = vmatpush1.msra.mxu0 0.0
    %969 = vmatprep.subr.mxu0 0.0
    %970 = vmatpush1.msra.mxu0 0.0
    %971 = vmatprep.subr.mxu0 0.0
    %972 = vmatpush1.msra.mxu0 0.0
    %973 = vmatprep.subr.mxu0 0.0
    %974 = vmatpush1.msra.mxu0 0.0
    %975 = vmatprep.subr.mxu0 0.0
    %976 = vmatpush1.msra.mxu0 0.0
    %977 = vmatprep.subr.mxu0 0.0
    %978 = vmatpush1.msra.mxu0 0.0
    %979 = vmatprep.subr.mxu0 0.0
    %980 = vmatpush1.msra.mxu0 0.0
    %981 = vmatprep.subr.mxu0 0.0
    %982 = vmatpush1.msra.mxu0 0.0
    %983 = vmatprep.subr.mxu0 0.0
    %984 = vmatpush1.msra.mxu0 0.0
    %985 = vmatprep.subr.mxu0 0.0
    %986 = vmatpush1.msra.mxu0 0.0
    %987 = vmatprep.subr.mxu0 0.0
    %988 = vmatpush1.msra.mxu0 0.0
    %989 = vmatprep.subr.mxu0 0.0
    %990 = vmatpush1.msra.mxu0 0.0
    %991 = vmatprep.subr.mxu0 0.0
    %992 = vmatpush1.msra.mxu0 0.0
    %993 = vmatprep.subr.mxu0 0.0
    %994 = vmatpush1.msra.mxu0 0.0
    %995 = vmatprep.subr.mxu0 0.0
    %996 = vmatpush1.msra.mxu0 0.0
    %997 = vmatprep.subr.mxu0 0.0
    %998 = vmatpush1.msra.mxu0 0.0
    %999 = vmatprep.subr.mxu0 0.0
    %1000 = vmatpush1.msra.mxu0 0.0
    %1001 = vmatprep.mubr.f32.mxu0 0.0
    %1002 = vmatmul.mubr.f32.gmra.mrb[0].mxu0 %v926
    %v1003 = vpop.f32.mrb[0].mxu0
    %v1004 = vadd.f32 %v840, %v1003
    %v1005 = vpop.f32.mrb[0].mxu0
    %1006 = vmatprep.mubr.f32.mxu0 0.0
    %1007 = vmatmul.mubr.f32.gmra.mrb[0].mxu0 %v929
    %v1008 = vpop.f32.mrb[0].mxu0
    %v1009 = vadd.f32 %v845, %v1008
    %v1010 = vpop.f32.mrb[0].mxu0
    %1011 = vmatprep.mubr.f32.mxu0 0.0
    %1012 = vmatmul.mubr.f32.gmra.mrb[0].mxu0 %v932
    %v1013 = vpop.f32.mrb[0].mxu0
    %v1014 = vadd.f32 %v850, %v1013
    %v1015 = vpop.f32.mrb[0].mxu0
    %1016 = vmatprep.mubr.f32.mxu0 0.0
    %1017 = vmatmul.mubr.f32.gmra.mrb[0].mxu0 %v935
    %v1018 = vpop.f32.mrb[0].mxu0
    %v1019 = vadd.f32 %v855, %v1018
    %v1020 = vpop.f32.mrb[0].mxu0
    %1021 = vdwg.mxu0
    %1022 = vset.pattern.permute.xlu0 4
    %1023 = vperm.xlu0 %1022, %v667
    %v1024 = vpop.permute.xlu0 %1023
    %1026 = vset.pattern.permute.xlu0 4
    %1027 = vperm.xlu0 %1026, %v668
    %v1028 = vpop.permute.xlu0 %1027
    %1030 = vset.pattern.permute.xlu0 4
    %1031 = vperm.xlu0 %1030, %v669
    %v1032 = vpop.permute.xlu0 %1031
    %1034 = vset.pattern.permute.xlu0 4
    %1035 = vperm.xlu0 %1034, %v670
    %v1036 = vpop.permute.xlu0 %1035
    %v1038 = vadd.f32 %v1004, %v1024
    %v1039 = vadd.f32 %v1009, %v1028
    %v1040 = vadd.f32 %v1014, %v1032
    %v1041 = vadd.f32 %v1019, %v1036
    %v1042 = vmul.f32 %v1038, 0.5
    %v1043 = vmul.f32 %v1039, 0.5
    %v1044 = vmul.f32 %v1040, 0.5
    %v1045 = vmul.f32 %v1041, 0.5
    %v1046 = vtanh.pop %v1042
    %v1047 = vtanh.pop %v1043
    %v1048 = vtanh.pop %v1044
    %v1049 = vtanh.pop %v1045
    %v1050 = vadd.f32 %v1046, 1.0
    %v1051 = vadd.f32 %v1047, 1.0
    %v1052 = vadd.f32 %v1048, 1.0
    %v1053 = vadd.f32 %v1049, 1.0
    %v1054 = vmul.f32 %v1050, 0.5
    %v1055 = vmul.f32 %v1051, 0.5
    %v1056 = vmul.f32 %v1052, 0.5
    %v1057 = vmul.f32 %v1053, 0.5
    %v1058 = vmul.f32 %v1038, %v1054
    %v1059 = vmul.f32 %v1039, %v1055
    %v1060 = vmul.f32 %v1040, %v1056
    %v1061 = vmul.f32 %v1041, %v1057
    %v1062 = vld [vmem:[%s5] sm:$0xff]
    %v1063 = vld [vmem:[%s5 + $0x8] sm:$0xff]
    %v1064 = vld [vmem:[%s5 + $0x10] sm:$0xff]
    %v1065 = vld [vmem:[%s5 + $0x18] sm:$0xff]
    %v1067 = vsel %vm728, %v1062, 0
    %v1070 = vsel %vm728, %v1063, 0
    %v1073 = vsel %vm728, %v1064, 0
    %v1076 = vsel %vm728, %v1065, 0
    %1078 = vmatprep.subr.mxu0 0.0
    %1079 = vmatpush1.msra.mxu0 %v1058
    %1080 = vmatprep.subr.mxu0 0.0
    %1081 = vmatpush1.msra.mxu0 %v1059
    %1082 = vmatprep.subr.mxu0 0.0
    %1083 = vmatpush1.msra.mxu0 %v1060
    %1084 = vmatprep.subr.mxu0 0.0
    %1085 = vmatpush1.msra.mxu0 %v1061
    %1086 = vmatprep.subr.mxu0 0.0
    %1087 = vmatpush1.msra.mxu0 0.0
    %1088 = vmatprep.subr.mxu0 0.0
    %1089 = vmatpush1.msra.mxu0 0.0
    %1090 = vmatprep.subr.mxu0 0.0
    %1091 = vmatpush1.msra.mxu0 0.0
    %1092 = vmatprep.subr.mxu0 0.0
    %1093 = vmatpush1.msra.mxu0 0.0
    %1094 = vmatprep.subr.mxu0 0.0
    %1095 = vmatpush1.msra.mxu0 0.0
    %1096 = vmatprep.subr.mxu0 0.0
    %1097 = vmatpush1.msra.mxu0 0.0
    %1098 = vmatprep.subr.mxu0 0.0
    %1099 = vmatpush1.msra.mxu0 0.0
    %1100 = vmatprep.subr.mxu0 0.0
    %1101 = vmatpush1.msra.mxu0 0.0
    %1102 = vmatprep.subr.mxu0 0.0
    %1103 = vmatpush1.msra.mxu0 0.0
    %1104 = vmatprep.subr.mxu0 0.0
    %1105 = vmatpush1.msra.mxu0 0.0
    %1106 = vmatprep.subr.mxu0 0.0
    %1107 = vmatpush1.msra.mxu0 0.0
    %1108 = vmatprep.subr.mxu0 0.0
    %1109 = vmatpush1.msra.mxu0 0.0
    %1110 = vmatprep.subr.mxu0 0.0
    %1111 = vmatpush1.msra.mxu0 0.0
    %1112 = vmatprep.subr.mxu0 0.0
    %1113 = vmatpush1.msra.mxu0 0.0
    %1114 = vmatprep.subr.mxu0 0.0
    %1115 = vmatpush1.msra.mxu0 0.0
    %1116 = vmatprep.subr.mxu0 0.0
    %1117 = vmatpush1.msra.mxu0 0.0
    %1118 = vmatprep.subr.mxu0 0.0
    %1119 = vmatpush1.msra.mxu0 0.0
    %1120 = vmatprep.subr.mxu0 0.0
    %1121 = vmatpush1.msra.mxu0 0.0
    %1122 = vmatprep.subr.mxu0 0.0
    %1123 = vmatpush1.msra.mxu0 0.0
    %1124 = vmatprep.subr.mxu0 0.0
    %1125 = vmatpush1.msra.mxu0 0.0
    %1126 = vmatprep.subr.mxu0 0.0
    %1127 = vmatpush1.msra.mxu0 0.0
    %1128 = vmatprep.subr.mxu0 0.0
    %1129 = vmatpush1.msra.mxu0 0.0
    %1130 = vmatprep.subr.mxu0 0.0
    %1131 = vmatpush1.msra.mxu0 0.0
    %1132 = vmatprep.subr.mxu0 0.0
    %1133 = vmatpush1.msra.mxu0 0.0
    %1134 = vmatprep.subr.mxu0 0.0
    %1135 = vmatpush1.msra.mxu0 0.0
    %1136 = vmatprep.subr.mxu0 0.0
    %1137 = vmatpush1.msra.mxu0 0.0
    %1138 = vmatprep.subr.mxu0 0.0
    %1139 = vmatpush1.msra.mxu0 0.0
    %1140 = vmatprep.subr.mxu0 0.0
    %1141 = vmatpush1.msra.mxu0 0.0
    %1142 = vmatprep.mubr.f32.mxu0 0.0
    %1143 = vmatmul.mubr.f32.gmra.mrb[0].mxu0 %v1067
    %v1144 = vpop.f32.mrb[0].mxu0
    %v1145 = vadd.f32 %v860, %v1144
    %v1146 = vpop.f32.mrb[0].mxu0
    %1147 = vmatprep.mubr.f32.mxu0 0.0
    %1148 = vmatmul.mubr.f32.gmra.mrb[0].mxu0 %v1070
    %v1149 = vpop.f32.mrb[0].mxu0
    %v1150 = vadd.f32 %v865, %v1149
    %v1151 = vpop.f32.mrb[0].mxu0
    %1152 = vmatprep.mubr.f32.mxu0 0.0
    %1153 = vmatmul.mubr.f32.gmra.mrb[0].mxu0 %v1073
    %v1154 = vpop.f32.mrb[0].mxu0
    %v1155 = vadd.f32 %v870, %v1154
    %v1156 = vpop.f32.mrb[0].mxu0
    %1157 = vmatprep.mubr.f32.mxu0 0.0
    %1158 = vmatmul.mubr.f32.gmra.mrb[0].mxu0 %v1076
    %v1159 = vpop.f32.mrb[0].mxu0
    %v1160 = vadd.f32 %v875, %v1159
    %v1161 = vpop.f32.mrb[0].mxu0
    %1162 = vdwg.mxu0
    %1163 = vset.pattern.permute.xlu0 5
    %1164 = vperm.xlu0 %1163, %v667
    %v1165 = vpop.permute.xlu0 %1164
    %1167 = vset.pattern.permute.xlu0 5
    %1168 = vperm.xlu0 %1167, %v668
    %v1169 = vpop.permute.xlu0 %1168
    %1171 = vset.pattern.permute.xlu0 5
    %1172 = vperm.xlu0 %1171, %v669
    %v1173 = vpop.permute.xlu0 %1172
    %1175 = vset.pattern.permute.xlu0 5
    %1176 = vperm.xlu0 %1175, %v670
    %v1177 = vpop.permute.xlu0 %1176
    %v1179 = vadd.f32 %v1145, %v1165
    %v1180 = vadd.f32 %v1150, %v1169
    %v1181 = vadd.f32 %v1155, %v1173
    %v1182 = vadd.f32 %v1160, %v1177
    %v1183 = vmul.f32 %v1179, 0.5
    %v1184 = vmul.f32 %v1180, 0.5
    %v1185 = vmul.f32 %v1181, 0.5
    %v1186 = vmul.f32 %v1182, 0.5
    %v1187 = vtanh.pop %v1183
    %v1188 = vtanh.pop %v1184
    %v1189 = vtanh.pop %v1185
    %v1190 = vtanh.pop %v1186
    %v1191 = vadd.f32 %v1187, 1.0
    %v1192 = vadd.f32 %v1188, 1.0
    %v1193 = vadd.f32 %v1189, 1.0
    %v1194 = vadd.f32 %v1190, 1.0
    %v1195 = vmul.f32 %v1191, 0.5
    %v1196 = vmul.f32 %v1192, 0.5
    %v1197 = vmul.f32 %v1193, 0.5
    %v1198 = vmul.f32 %v1194, 0.5
    %v1199 = vmul.f32 %v1179, %v1195
    %v1200 = vmul.f32 %v1180, %v1196
    %v1201 = vmul.f32 %v1181, %v1197
    %v1202 = vmul.f32 %v1182, %v1198
    %v1203 = vld [vmem:[%s6] sm:$0xff]
    %v1204 = vld [vmem:[%s6 + $0x8] sm:$0xff]
    %v1205 = vld [vmem:[%s6 + $0x10] sm:$0xff]
    %v1206 = vld [vmem:[%s6 + $0x18] sm:$0xff]
    %v1208 = vsel %vm728, %v1203, 0
    %v1211 = vsel %vm728, %v1204, 0
    %v1214 = vsel %vm728, %v1205, 0
    %v1217 = vsel %vm728, %v1206, 0
    %1219 = vmatprep.subr.mxu0 0.0
    %1220 = vmatpush1.msra.mxu0 %v1199
    %1221 = vmatprep.subr.mxu0 0.0
    %1222 = vmatpush1.msra.mxu0 %v1200
    %1223 = vmatprep.subr.mxu0 0.0
    %1224 = vmatpush1.msra.mxu0 %v1201
    %1225 = vmatprep.subr.mxu0 0.0
    %1226 = vmatpush1.msra.mxu0 %v1202
    %1227 = vmatprep.subr.mxu0 0.0
    %1228 = vmatpush1.msra.mxu0 0.0
    %1229 = vmatprep.subr.mxu0 0.0
    %1230 = vmatpush1.msra.mxu0 0.0
    %1231 = vmatprep.subr.mxu0 0.0
    %1232 = vmatpush1.msra.mxu0 0.0
    %1233 = vmatprep.subr.mxu0 0.0
    %1234 = vmatpush1.msra.mxu0 0.0
    %1235 = vmatprep.subr.mxu0 0.0
    %1236 = vmatpush1.msra.mxu0 0.0
    %1237 = vmatprep.subr.mxu0 0.0
    %1238 = vmatpush1.msra.mxu0 0.0
    %1239 = vmatprep.subr.mxu0 0.0
    %1240 = vmatpush1.msra.mxu0 0.0
    %1241 = vmatprep.subr.mxu0 0.0
    %1242 = vmatpush1.msra.mxu0 0.0
    %1243 = vmatprep.subr.mxu0 0.0
    %1244 = vmatpush1.msra.mxu0 0.0
    %1245 = vmatprep.subr.mxu0 0.0
    %1246 = vmatpush1.msra.mxu0 0.0
    %1247 = vmatprep.subr.mxu0 0.0
    %1248 = vmatpush1.msra.mxu0 0.0
    %1249 = vmatprep.subr.mxu0 0.0
    %1250 = vmatpush1.msra.mxu0 0.0
    %1251 = vmatprep.subr.mxu0 0.0
    %1252 = vmatpush1.msra.mxu0 0.0
    %1253 = vmatprep.subr.mxu0 0.0
    %1254 = vmatpush1.msra.mxu0 0.0
    %1255 = vmatprep.subr.mxu0 0.0
    %1256 = vmatpush1.msra.mxu0 0.0
    %1257 = vmatprep.subr.mxu0 0.0
    %1258 = vmatpush1.msra.mxu0 0.0
    %1259 = vmatprep.subr.mxu0 0.0
    %1260 = vmatpush1.msra.mxu0 0.0
    %1261 = vmatprep.subr.mxu0 0.0
    %1262 = vmatpush1.msra.mxu0 0.0
    %1263 = vmatprep.subr.mxu0 0.0
    %1264 = vmatpush1.msra.mxu0 0.0
    %1265 = vmatprep.subr.mxu0 0.0
    %1266 = vmatpush1.msra.mxu0 0.0
    %1267 = vmatprep.subr.mxu0 0.0
    %1268 = vmatpush1.msra.mxu0 0.0
    %1269 = vmatprep.subr.mxu0 0.0
    %1270 = vmatpush1.msra.mxu0 0.0
    %1271 = vmatprep.subr.mxu0 0.0
    %1272 = vmatpush1.msra.mxu0 0.0
    %1273 = vmatprep.subr.mxu0 0.0
    %1274 = vmatpush1.msra.mxu0 0.0
    %1275 = vmatprep.subr.mxu0 0.0
    %1276 = vmatpush1.msra.mxu0 0.0
    %1277 = vmatprep.subr.mxu0 0.0
    %1278 = vmatpush1.msra.mxu0 0.0
    %1279 = vmatprep.subr.mxu0 0.0
    %1280 = vmatpush1.msra.mxu0 0.0
    %1281 = vmatprep.subr.mxu0 0.0
    %1282 = vmatpush1.msra.mxu0 0.0
    %1283 = vmatprep.mubr.f32.mxu0 0.0
    %1284 = vmatmul.mubr.f32.gmra.mrb[0].mxu0 %v1208
    %v1285 = vpop.f32.mrb[0].mxu0
    %v1286 = vadd.f32 %v880, %v1285
    %v1287 = vpop.f32.mrb[0].mxu0
    %1288 = vmatprep.mubr.f32.mxu0 0.0
    %1289 = vmatmul.mubr.f32.gmra.mrb[0].mxu0 %v1211
    %v1290 = vpop.f32.mrb[0].mxu0
    %v1291 = vadd.f32 %v885, %v1290
    %v1292 = vpop.f32.mrb[0].mxu0
    %1293 = vmatprep.mubr.f32.mxu0 0.0
    %1294 = vmatmul.mubr.f32.gmra.mrb[0].mxu0 %v1214
    %v1295 = vpop.f32.mrb[0].mxu0
    %v1296 = vadd.f32 %v890, %v1295
    %v1297 = vpop.f32.mrb[0].mxu0
    %1298 = vmatprep.mubr.f32.mxu0 0.0
    %1299 = vmatmul.mubr.f32.gmra.mrb[0].mxu0 %v1217
    %v1300 = vpop.f32.mrb[0].mxu0
    %v1301 = vadd.f32 %v895, %v1300
    %v1302 = vpop.f32.mrb[0].mxu0
    %1303 = vdwg.mxu0
    %1304 = vset.pattern.permute.xlu0 6
    %1305 = vperm.xlu0 %1304, %v667
    %v1306 = vpop.permute.xlu0 %1305
    %1308 = vset.pattern.permute.xlu0 6
    %1309 = vperm.xlu0 %1308, %v668
    %v1310 = vpop.permute.xlu0 %1309
    %1312 = vset.pattern.permute.xlu0 6
    %1313 = vperm.xlu0 %1312, %v669
    %v1314 = vpop.permute.xlu0 %1313
    %1316 = vset.pattern.permute.xlu0 6
    %1317 = vperm.xlu0 %1316, %v670
    %v1318 = vpop.permute.xlu0 %1317
    %v1320 = vadd.f32 %v1286, %v1306
    %v1321 = vadd.f32 %v1291, %v1310
    %v1322 = vadd.f32 %v1296, %v1314
    %v1323 = vadd.f32 %v1301, %v1318
    %v1324 = vmul.f32 %v1320, 0.5
    %v1325 = vmul.f32 %v1321, 0.5
    %v1326 = vmul.f32 %v1322, 0.5
    %v1327 = vmul.f32 %v1323, 0.5
    %v1328 = vtanh.pop %v1324
    %v1329 = vtanh.pop %v1325
    %v1330 = vtanh.pop %v1326
    %v1331 = vtanh.pop %v1327
    %v1332 = vadd.f32 %v1328, 1.0
    %v1333 = vadd.f32 %v1329, 1.0
    %v1334 = vadd.f32 %v1330, 1.0
    %v1335 = vadd.f32 %v1331, 1.0
    %v1336 = vmul.f32 %v1332, 0.5
    %v1337 = vmul.f32 %v1333, 0.5
    %v1338 = vmul.f32 %v1334, 0.5
    %v1339 = vmul.f32 %v1335, 0.5
    %v1340 = vmul.f32 %v1320, %v1336
    %v1341 = vmul.f32 %v1321, %v1337
    %v1342 = vmul.f32 %v1322, %v1338
    %v1343 = vmul.f32 %v1323, %v1339
    %1344 = vset.pattern.permute.xlu0 7
    %1345 = vperm.xlu0 %1344, %v667
    %v1346 = vpop.permute.xlu0 %1345
    %1348 = vset.pattern.permute.xlu0 7
    %1349 = vperm.xlu0 %1348, %v668
    %v1350 = vpop.permute.xlu0 %1349
    %1352 = vset.pattern.permute.xlu0 7
    %1353 = vperm.xlu0 %1352, %v669
    %v1354 = vpop.permute.xlu0 %1353
    %1356 = vset.pattern.permute.xlu0 7
    %1357 = vperm.xlu0 %1356, %v670
    %v1358 = vpop.permute.xlu0 %1357
    %v1360 = vmul.f32 %v1346, %v1340
    %v1361 = vmul.f32 %v1350, %v1341
    %v1362 = vmul.f32 %v1354, %v1342
    %v1363 = vmul.f32 %v1358, %v1343
    %v1364 = vadd.f32 %v1360, %v1361
    %v1365 = vadd.f32 %v1364, %v1362
    %v1366 = vadd.f32 %v1365, %v1363
    %v1367 = vrot.slane %v1366, 4
    %v1368 = vadd.f32 %v1366, %v1367
    %v1369 = vrot.slane %v1368, 2
    %v1370 = vadd.f32 %v1368, %v1369
    %v1371 = vrot.slane %v1370, 1
    %v1372 = vadd.f32 %v1370, %v1371
    %v1373 = vld [vmem:[%s7] sm:$0x1]
    %1375 = vset.pattern.permute.xlu0 8
    %1376 = vperm.xlu0 %1375, %v1373
    %v1377 = vpop.permute.xlu0 %1376
    %v1379 = vadd.f32 %v1372, %v1377
    %1380 = vst [vmem:[#allocation2] sm:$0x1] %v1379
    // Predicated region
    $region34: #{tpu_custom_call.1} parent=1 // pred_check
      _
    $region35: #{tpu_custom_call.1} parent=1 // pred_check_branch
      %1382 = sbr.rel (0) target = $region37
    $region36: #{tpu_custom_call.1} parent=1 // pred_region
      %s1384 = ssub.s32 16, 16
      %1385 = vsyncadd [#allocation3], %s1384
      %s1387 = sshll.u32 [#allocation2], 4
      %s1388 = int_to_ptr.vmem [resolvable:$true] %s1387
      %1390 = dma.vmem_to_hbm [thread:$0]  %s1388, 16, %s8, [#allocation3]
    $region37: #{tpu_custom_call.1} parent=1 // pred_fallthru
      _
    // Predicated region
    $region38: #{tpu_custom_call.1} parent=1 // pred_check
      _
    $region39: #{tpu_custom_call.1} parent=1 // pred_check_branch
      %1392 = sbr.rel (0) target = $region41
    $region40: #{tpu_custom_call.1} parent=1 // pred_region
      %1393 = dma.done [#allocation3], 16
    $region41: #{tpu_custom_call.1} parent=1 // pred_fallthru
      _
    %1394 = vsyncpa [#allocation3], 1

</llo_original>
